<compile_context>
chip_gen: v6e
topology: v6e:2x2x1
jax: 0.10.0
libtpu: 0.0.40
codegen_flags: <defaults>
</compile_context>

<pallas_src>
import jax
import jax.numpy as jnp
import numpy as np
from jax.experimental import pallas as pl
from jax.experimental.pallas import tpu as pltpu


def classifier_kernel(xT_ref, w1_ref, b1_ref, w2_ref, b2_ref, w3_ref, b3_ref, o_ref):
    # xT_ref: (D_in, tm) bf16   w1_ref: (H1, D_in) bf16   b1_ref: (H1, 1) f32
    # w2_ref: (H2, H1) bf16     b2_ref: (H2, 1) f32       w3_ref: (H2, 1) f32
    # b3_ref: (1,) f32 in SMEM  o_ref:  (1, tm) f32 (lane-dense)

    # Layer 1: (H1, D_in) @ (D_in, tm) -> (H1, tm) on the MXU, f32 accumulate.
    h1 = jnp.dot(w1_ref[...], xT_ref[...], preferred_element_type=jnp.float32)
    h1 = jnp.maximum(h1 + b1_ref[...], 0.0)                      # bias + ReLU (VPU)

    # Layer 2: (H2, H1) @ (H1, tm) -> (H2, tm); the bf16 re-cast of h1 is free
    # VPU filler under the MXU.
    h2 = jnp.dot(w2_ref[...], h1.astype(w2_ref.dtype),
                 preferred_element_type=jnp.float32)
    h2 = jnp.tanh(h2 + b2_ref[...])                              # bias + tanh (VPU/EUP)

    # Layer 3 (out_features == 1): VPU multiply + sublane (XLU) reduction instead
    # of a 1-row MXU matmul; result is a lane-dense (1, tm) row.
    logit = jnp.sum(h2 * w3_ref[...], axis=0, keepdims=True) + b3_ref[0]
    o_ref[...] = jax.nn.sigmoid(logit).astype(o_ref.dtype)


def _pick_tm(B, cap=16384):
    """Largest batch tile: a divisor of B, lane-aligned, capped so the per-step
    working set (double-buffered bf16 x tile + f32 intermediates, ~0.7 KB/row)
    stays well under the 32 MiB scoped-VMEM budget.  Prefers 256-alignment
    (v7x core split / MXU width), then 128, then the full array (always legal)."""
    for align in (256, 128):
        t = min(cap, B)
        t -= t % align
        while t >= align:
            if B % t == 0:
                return t
            t -= align
    return B


def _batch_dim_semantics(num_steps):
    """Use CORE_PARALLEL on v7x (2 TensorCores) when the batch grid splits into
    an even number of steps; plain PARALLEL otherwise (1-TC chips)."""
    try:
        kind = jax.devices()[0].device_kind.lower()
    except Exception:
        kind = ""
    is_v7 = ("v7" in kind) or ("tpu7" in kind)
    if is_v7 and num_steps >= 2 and num_steps % 2 == 0:
        return (pltpu.CORE_PARALLEL,)
    return (pltpu.PARALLEL,)


def classifier_nn(x, w1, b1, w2, b2, w3, b3, *, tm=None):
    """Forward pass of ClassifierNN.

    x: (B, input_size) f32; weights in PyTorch nn.Linear layout:
    w1 (H1, D_in), w2 (H2, H1), w3 (1, H2); biases (H1,), (H2,), (1,).
    Returns (B, 1) f32.
    """
    B, D_in = x.shape
    H1 = w1.shape[0]
    H2 = w2.shape[0]
    if tm is None:
        tm = _pick_tm(B)
    assert B % tm == 0
    num_steps = B // tm

    # One fused transpose + bf16-cast pass over x (batch -> lanes, MXU dtype);
    # the kernel then reads only 2 B/elt of x.  Weights/biases are tiny and
    # grid-invariant (DMA'd once per call).
    xT = x.T.astype(jnp.bfloat16)                       # (D_in, B)
    w1_lo = w1.astype(jnp.bfloat16)                     # (H1, D_in)
    w2_lo = w2.astype(jnp.bfloat16)                     # (H2, H1)
    b1c = b1.reshape(H1, 1).astype(jnp.float32)
    b2c = b2.reshape(H2, 1).astype(jnp.float32)
    w3c = w3.reshape(H2, 1).astype(jnp.float32)         # column for the VPU/XLU path
    b3s = b3.reshape(1).astype(jnp.float32)             # scalar -> SMEM

    cost = pl.CostEstimate(
        flops=2 * B * (D_in * H1 + H1 * H2 + H2),
        transcendentals=B * (H2 + 1),
        bytes_accessed=(B * D_in * 2                    # xT bf16
                        + (H1 * D_in + H2 * H1) * 2     # bf16 weights
                        + (H1 + H2 + H2 + 1) * 4        # f32 biases + w3
                        + B * 4),                       # output
    )

    out = pl.pallas_call(
        classifier_kernel,
        out_shape=jax.ShapeDtypeStruct((1, B), jnp.float32),
        grid_spec=pltpu.PrefetchScalarGridSpec(
            num_scalar_prefetch=0,
            grid=(num_steps,),
            in_specs=[
                pl.BlockSpec((D_in, tm), lambda i: (0, i)),   # xT tile (bf16)
                pl.BlockSpec((H1, D_in), lambda i: (0, 0)),   # W1 (grid-invariant)
                pl.BlockSpec((H1, 1),    lambda i: (0, 0)),   # b1 column (f32)
                pl.BlockSpec((H2, H1),   lambda i: (0, 0)),   # W2 (grid-invariant)
                pl.BlockSpec((H2, 1),    lambda i: (0, 0)),   # b2 column (f32)
                pl.BlockSpec((H2, 1),    lambda i: (0, 0)),   # w3 column (f32)
                pl.BlockSpec(memory_space=pltpu.MemorySpace.SMEM),  # b3 scalar
            ],
            out_specs=pl.BlockSpec((1, tm), lambda i: (0, i)),      # lane-dense row
        ),
        compiler_params=pltpu.CompilerParams(
            dimension_semantics=_batch_dim_semantics(num_steps),
            vmem_limit_bytes=32 * 1024 * 1024,
        ),
        cost_estimate=cost,
    )(xT, w1_lo, b1c, w2_lo, b2c, w3c, b3s)

    return out.reshape(B, 1)                            # metadata-only reshape


def _reference(x, w1, b1, w2, b2, w3, b3):
    h1 = jnp.maximum(x @ w1.T + b1, 0.0)
    h2 = jnp.tanh(h1 @ w2.T + b2)
    return jax.nn.sigmoid(h2 @ w3.T + b3)


if __name__ == "__main__":
    # Shapes consistent with the module: input=32, hidden1=64, hidden2=32.
    B, D_in, H1, H2 = 2048, 32, 64, 32

    key = jax.random.PRNGKey(0)
    ks = jax.random.split(key, 7)

    # PyTorch-style init: U(-1/sqrt(fan_in), 1/sqrt(fan_in)), weights (out, in).
    def linear_init(kw, kb, fan_in, fan_out):
        bound = 1.0 / np.sqrt(fan_in)
        w = jax.random.uniform(kw, (fan_out, fan_in), jnp.float32, -bound, bound)
        b = jax.random.uniform(kb, (fan_out,), jnp.float32, -bound, bound)
        return w, b

    x = jax.random.normal(ks[0], (B, D_in), jnp.float32)
    w1, b1 = linear_init(ks[1], ks[2], D_in, H1)
    w2, b2 = linear_init(ks[3], ks[4], H1, H2)
    w3, b3 = linear_init(ks[5], ks[6], H2, 1)

    out = jax.block_until_ready(classifier_nn(x, w1, b1, w2, b2, w3, b3))

    ref = _reference(x, w1, b1, w2, b2, w3, b3)
    # bf16 MXU inputs -> loosen tolerance vs. the f32 reference.
    np.testing.assert_allclose(np.asarray(out), np.asarray(ref), rtol=2e-2, atol=2e-2)
    assert out.shape == (B, 1)
    assert np.all((np.asarray(out) > 0.0) & (np.asarray(out) < 1.0))

    print("KERNEL_OK")
</pallas_src>

<mosaic_0001>
module attributes {stable_mosaic.version = 11 : i64} {
  func.func @classifier_kernel(%arg0: i32, %arg1: memref<32x2048xbf16, #tpu.memory_space<vmem>>, %arg2: memref<64x32xbf16, #tpu.memory_space<vmem>>, %arg3: memref<64x1xf32, #tpu.memory_space<vmem>>, %arg4: memref<32x64xbf16, #tpu.memory_space<vmem>>, %arg5: memref<32x1xf32, #tpu.memory_space<vmem>>, %arg6: memref<32x1xf32, #tpu.memory_space<vmem>>, %arg7: memref<1xf32, #tpu.memory_space<smem>>, %arg8: memref<1x2048xf32, #tpu.memory_space<vmem>>) attributes {dimension_semantics = [#tpu.dimension_semantics<parallel>], iteration_bounds = array<i64: 1>, scalar_prefetch = 0 : i64, scratch_operands = 0 : i64, tpu.core_type = #tpu.core_type<tc>, window_params = [{transform_indices = @transform_0, window_bounds = array<i64: 32, 2048>}, {pipeline_mode = #tpu.pipeline_mode<synchronous>, transform_indices = @transform_1, window_bounds = array<i64: 64, 32>}, {pipeline_mode = #tpu.pipeline_mode<synchronous>, transform_indices = @transform_2, window_bounds = array<i64: 64, 1>}, {pipeline_mode = #tpu.pipeline_mode<synchronous>, transform_indices = @transform_3, window_bounds = array<i64: 32, 64>}, {pipeline_mode = #tpu.pipeline_mode<synchronous>, transform_indices = @transform_4, window_bounds = array<i64: 32, 1>}, {pipeline_mode = #tpu.pipeline_mode<synchronous>, transform_indices = @transform_5, window_bounds = array<i64: 32, 1>}, {transform_indices = @transform_6, window_bounds = array<i64: 1>}, {transform_indices = @transform_7, window_bounds = array<i64: 1, 2048>}]} {
    %c0 = arith.constant 0 : index
    %c0_0 = arith.constant 0 : index
    %0 = vector.load %arg2[%c0, %c0_0] : memref<64x32xbf16, #tpu.memory_space<vmem>>, vector<64x32xbf16>
    %c0_1 = arith.constant 0 : index
    %c0_2 = arith.constant 0 : index
    %1 = vector.load %arg1[%c0_1, %c0_2] : memref<32x2048xbf16, #tpu.memory_space<vmem>>, vector<32x2048xbf16>
    %cst = arith.constant dense<0.000000e+00> : vector<64x2048xf32>
    %2 = tpu.matmul %0, %1, %cst {dimension_numbers = #tpu.dot_dimension_numbers<[1], [0], [0], [1], [0, 0, 1, 1], [], []>} : vector<64x32xbf16>, vector<32x2048xbf16>, vector<64x2048xf32> -> vector<64x2048xf32>
    %c0_3 = arith.constant 0 : index
    %c0_4 = arith.constant 0 : index
    %3 = vector.load %arg3[%c0_3, %c0_4] : memref<64x1xf32, #tpu.memory_space<vmem>>, vector<64x1xf32>
    %4 = vector.broadcast %3 : vector<64x1xf32> to vector<64x2048xf32>
    %5 = arith.addf %2, %4 : vector<64x2048xf32>
    %cst_5 = arith.constant 0.000000e+00 : f32
    %6 = vector.broadcast %cst_5 : f32 to vector<64x2048xf32>
    %7 = arith.maximumf %5, %6 : vector<64x2048xf32>
    %c0_6 = arith.constant 0 : index
    %c0_7 = arith.constant 0 : index
    %8 = vector.load %arg4[%c0_6, %c0_7] : memref<32x64xbf16, #tpu.memory_space<vmem>>, vector<32x64xbf16>
    %9 = arith.truncf %7 : vector<64x2048xf32> to vector<64x2048xbf16>
    %cst_8 = arith.constant dense<0.000000e+00> : vector<32x2048xf32>
    %10 = tpu.matmul %8, %9, %cst_8 {dimension_numbers = #tpu.dot_dimension_numbers<[1], [0], [0], [1], [0, 0, 1, 1], [], []>} : vector<32x64xbf16>, vector<64x2048xbf16>, vector<32x2048xf32> -> vector<32x2048xf32>
    %c0_9 = arith.constant 0 : index
    %c0_10 = arith.constant 0 : index
    %11 = vector.load %arg5[%c0_9, %c0_10] : memref<32x1xf32, #tpu.memory_space<vmem>>, vector<32x1xf32>
    %12 = vector.broadcast %11 : vector<32x1xf32> to vector<32x2048xf32>
    %13 = arith.addf %10, %12 : vector<32x2048xf32>
    %14 = math.tanh %13 : vector<32x2048xf32>
    %c0_11 = arith.constant 0 : index
    %c0_12 = arith.constant 0 : index
    %15 = vector.load %arg6[%c0_11, %c0_12] : memref<32x1xf32, #tpu.memory_space<vmem>>, vector<32x1xf32>
    %16 = vector.broadcast %15 : vector<32x1xf32> to vector<32x2048xf32>
    %17 = arith.mulf %14, %16 : vector<32x2048xf32>
    %cst_13 = arith.constant dense<0.000000e+00> : vector<2048xf32>
    %18 = vector.multi_reduction <add>, %17, %cst_13 [0] : vector<32x2048xf32> to vector<2048xf32>
    %19 = vector.shape_cast %18 : vector<2048xf32> to vector<1x2048xf32>
    %c0_14 = arith.constant 0 : index
    %20 = memref.load %arg7[%c0_14] : memref<1xf32, #tpu.memory_space<smem>>
    %21 = vector.broadcast %20 : f32 to vector<1x2048xf32>
    %22 = arith.addf %19, %21 : vector<1x2048xf32>
    %23 = arith.negf %22 : vector<1x2048xf32>
    %24 = math.exp %23 : vector<1x2048xf32>
    %cst_15 = arith.constant 1.000000e+00 : f32
    %25 = vector.broadcast %cst_15 : f32 to vector<1x2048xf32>
    %26 = arith.addf %25, %24 : vector<1x2048xf32>
    %27 = arith.divf %25, %26 : vector<1x2048xf32>
    %c0_16 = arith.constant 0 : index
    %c0_17 = arith.constant 0 : index
    %28 = vector.load %arg8[%c0_16, %c0_17] : memref<1x2048xf32, #tpu.memory_space<vmem>>, vector<1x2048xf32>
    tpu.vector_store %arg8[%c0_16, %c0_17], %27 {strides = array<i32>} : memref<1x2048xf32, #tpu.memory_space<vmem>>, vector<1x2048xf32>,
    return
  }
  func.func @transform_0(%arg0: i32) -> (i32, i32) {
    %c0_i32 = arith.constant 0 : i32
    %c0_i32_0 = arith.constant 0 : i32
    return %c0_i32, %arg0 : i32, i32
  }
  func.func @transform_1(%arg0: i32) -> (i32, i32) {
    %c0_i32 = arith.constant 0 : i32
    %c0_i32_0 = arith.constant 0 : i32
    %c0_i32_1 = arith.constant 0 : i32
    return %c0_i32, %c0_i32_0 : i32, i32
  }
  func.func @transform_2(%arg0: i32) -> (i32, i32) {
    %c0_i32 = arith.constant 0 : i32
    %c0_i32_0 = arith.constant 0 : i32
    %c0_i32_1 = arith.constant 0 : i32
    return %c0_i32, %c0_i32_0 : i32, i32
  }
  func.func @transform_3(%arg0: i32) -> (i32, i32) {
    %c0_i32 = arith.constant 0 : i32
    %c0_i32_0 = arith.constant 0 : i32
    %c0_i32_1 = arith.constant 0 : i32
    return %c0_i32, %c0_i32_0 : i32, i32
  }
  func.func @transform_4(%arg0: i32) -> (i32, i32) {
    %c0_i32 = arith.constant 0 : i32
    %c0_i32_0 = arith.constant 0 : i32
    %c0_i32_1 = arith.constant 0 : i32
    return %c0_i32, %c0_i32_0 : i32, i32
  }
  func.func @transform_5(%arg0: i32) -> (i32, i32) {
    %c0_i32 = arith.constant 0 : i32
    %c0_i32_0 = arith.constant 0 : i32
    %c0_i32_1 = arith.constant 0 : i32
    return %c0_i32, %c0_i32_0 : i32, i32
  }
  func.func @transform_6(%arg0: i32) -> i32 {
    %c0_i32 = arith.constant 0 : i32
    %c0_i32_0 = arith.constant 0 : i32
    return %c0_i32 : i32
  }
  func.func @transform_7(%arg0: i32) -> (i32, i32) {
    %c0_i32 = arith.constant 0 : i32
    %c0_i32_0 = arith.constant 0 : i32
    return %c0_i32, %arg0 : i32, i32
  }
}

</mosaic_0001>

<llo_original>
// kernel: tpu_custom_call.1
$region0: #{tpu_custom_call.1}
  #allocation0 [shape = 'u32[]', space=smem, size = 0x4, offset = 0x4, fixed_abs, tag = 'smem constant byte address 0x4 - core index']
  #allocation1 [shape = 'u32[144,128]{1,0:T(1,128)}', space=vmem, size = 0x12000, scoped, tag = 'internal scratch']
  #allocation2 [shape = 'f32[1]{0:T(128)S(6)}', space=smem, size = 0x200, scoped, tag = 'scoped memory for tpu_custom_call.1']
  %s0 = inlined_call_operand.hbm [shape: bf16[32,2048], index: 0, kind: input, shape index: {}]
  %s1 = inlined_call_operand.vmem [shape: bf16[64,32], index: 1, kind: input, shape index: {}]
  %s2 = inlined_call_operand.vmem [shape: f32[64,1], index: 2, kind: input, shape index: {}]
  %s3 = inlined_call_operand.vmem [shape: bf16[32,64], index: 3, kind: input, shape index: {}]
  %s4 = inlined_call_operand.vmem [shape: f32[32,1], index: 4, kind: input, shape index: {}]
  %s5 = inlined_call_operand.vmem [shape: f32[32,1], index: 5, kind: input, shape index: {}]
  %s6 = inlined_call_operand.<no memory space> [shape: f32[1], index: 6, kind: input, shape index: {}]
  %s7 = inlined_call_operand.hbm [shape: f32[1,2048], index: 7, kind: output, shape index: {}]
  %s8 = sld [smem:[#allocation0]]
  $region42: #{tpu_custom_call.1} parent=0
    _
  %s10 = ssub.s32 1, %s8
  %s11 = scalar_select 0, %s10, %s8
  %12 = sst [smem:[#allocation2]] %s6
  $region1: #{tpu_custom_call.1} parent=0
    #allocation3 [shape = 'u8[131072]{0}', space=vmem, size = 0x20000, scoped, tag = 'input window, operand 0, single buffered']
    #allocation4 [shape = 's32[1]{0}', space=sflag, size = 0x4, scoped, tag = 'scoped memory for tpu_custom_call.1']
    #allocation5 [shape = 's32[1]{0}', space=sflag, size = 0x4, scoped, tag = 'scoped memory for tpu_custom_call.1']
    #allocation6 [shape = 'u8[8192]{0}', space=vmem, size = 0x2000, scoped, tag = 'output window, operand 0, single buffered']
    %13 = vsyncpa [#allocation4], 0
    %14 = vsyncpa [#allocation5], 0
    // Predicated region
    $region2: #{tpu_custom_call.1} parent=1 // pred_check
      _
    $region3: #{tpu_custom_call.1} parent=1 // pred_check_branch
      %16 = sbr.rel (0) target = $region5
    $region4: #{tpu_custom_call.1} parent=1 // pred_region
      %s18 = ssub.s32 4096, 4096
      %19 = vsyncadd [#allocation4], %s18
      %s20 = sshll.u32 [#allocation3], 4
      %s21 = int_to_ptr.vmem [resolvable:$true] %s20
      %26 = dma.hbm_to_vmem [thread:$0]  %s0, 4096, %s21, [#allocation4], 1024, 1024, 64
    $region5: #{tpu_custom_call.1} parent=1 // pred_fallthru
      _
    // Predicated region
    $region6: #{tpu_custom_call.1} parent=1 // pred_check
      _
    $region7: #{tpu_custom_call.1} parent=1 // pred_check_branch
      %28 = sbr.rel (0) target = $region9
    $region8: #{tpu_custom_call.1} parent=1 // pred_region
      _
    $region9: #{tpu_custom_call.1} parent=1 // pred_fallthru
      _
    // Predicated region
    $region10: #{tpu_custom_call.1} parent=1 // pred_check
      _
    $region11: #{tpu_custom_call.1} parent=1 // pred_check_branch
      %30 = sbr.rel (0) target = $region13
    $region12: #{tpu_custom_call.1} parent=1 // pred_region
      _
    $region13: #{tpu_custom_call.1} parent=1 // pred_fallthru
      _
    // Predicated region
    $region14: #{tpu_custom_call.1} parent=1 // pred_check
      _
    $region15: #{tpu_custom_call.1} parent=1 // pred_check_branch
      %32 = sbr.rel (0) target = $region17
    $region16: #{tpu_custom_call.1} parent=1 // pred_region
      _
    $region17: #{tpu_custom_call.1} parent=1 // pred_fallthru
      _
    // Predicated region
    $region18: #{tpu_custom_call.1} parent=1 // pred_check
      _
    $region19: #{tpu_custom_call.1} parent=1 // pred_check_branch
      %34 = sbr.rel (0) target = $region21
    $region20: #{tpu_custom_call.1} parent=1 // pred_region
      _
    $region21: #{tpu_custom_call.1} parent=1 // pred_fallthru
      _
    // Predicated region
    $region22: #{tpu_custom_call.1} parent=1 // pred_check
      _
    $region23: #{tpu_custom_call.1} parent=1 // pred_check_branch
      %36 = sbr.rel (0) target = $region25
    $region24: #{tpu_custom_call.1} parent=1 // pred_region
      _
    $region25: #{tpu_custom_call.1} parent=1 // pred_fallthru
      _
    // Predicated region
    $region26: #{tpu_custom_call.1} parent=1 // pred_check
      _
    $region27: #{tpu_custom_call.1} parent=1 // pred_check_branch
      %38 = sbr.rel (0) target = $region29
    $region28: #{tpu_custom_call.1} parent=1 // pred_region
      _
    $region29: #{tpu_custom_call.1} parent=1 // pred_fallthru
      _
    // Predicated region
    $region30: #{tpu_custom_call.1} parent=1 // pred_check
      _
    $region31: #{tpu_custom_call.1} parent=1 // pred_check_branch
      %40 = sbr.rel (0) target = $region33
    $region32: #{tpu_custom_call.1} parent=1 // pred_region
      %41 = dma.done [#allocation4], 4096
    $region33: #{tpu_custom_call.1} parent=1 // pred_fallthru
      _
    %v43 = vld [vmem:[%s1] sm:$0xf]
    %v44 = vld [vmem:[%s1 + $0x4] sm:$0xf]
    %v45 = vld [vmem:[%s1 + $0x8] sm:$0xf]
    %v46 = vld [vmem:[%s1 + $0xc] sm:$0xf]
    %v47 = vld [vmem:[%s1 + $0x10] sm:$0xf]
    %v48 = vld [vmem:[%s1 + $0x14] sm:$0xf]
    %v49 = vld [vmem:[%s1 + $0x18] sm:$0xf]
    %v50 = vld [vmem:[%s1 + $0x1c] sm:$0xf]
    %v51 = vld [vmem:[#allocation3] sm:$0xff]
    %v52 = vld [vmem:[#allocation3 + $0x8] sm:$0xff]
    %v53 = vld [vmem:[#allocation3 + $0x10] sm:$0xff]
    %v54 = vld [vmem:[#allocation3 + $0x18] sm:$0xff]
    %v55 = vld [vmem:[#allocation3 + $0x20] sm:$0xff]
    %v56 = vld [vmem:[#allocation3 + $0x28] sm:$0xff]
    %v57 = vld [vmem:[#allocation3 + $0x30] sm:$0xff]
    %v58 = vld [vmem:[#allocation3 + $0x38] sm:$0xff]
    %v59 = vld [vmem:[#allocation3 + $0x40] sm:$0xff]
    %v60 = vld [vmem:[#allocation3 + $0x48] sm:$0xff]
    %v61 = vld [vmem:[#allocation3 + $0x50] sm:$0xff]
    %v62 = vld [vmem:[#allocation3 + $0x58] sm:$0xff]
    %v63 = vld [vmem:[#allocation3 + $0x60] sm:$0xff]
    %v64 = vld [vmem:[#allocation3 + $0x68] sm:$0xff]
    %v65 = vld [vmem:[#allocation3 + $0x70] sm:$0xff]
    %v66 = vld [vmem:[#allocation3 + $0x78] sm:$0xff]
    %v67 = vld [vmem:[#allocation3 + $0x80] sm:$0xff]
    %v68 = vld [vmem:[#allocation3 + $0x88] sm:$0xff]
    %v69 = vld [vmem:[#allocation3 + $0x90] sm:$0xff]
    %v70 = vld [vmem:[#allocation3 + $0x98] sm:$0xff]
    %v71 = vld [vmem:[#allocation3 + $0xa0] sm:$0xff]
    %v72 = vld [vmem:[#allocation3 + $0xa8] sm:$0xff]
    %v73 = vld [vmem:[#allocation3 + $0xb0] sm:$0xff]
    %v74 = vld [vmem:[#allocation3 + $0xb8] sm:$0xff]
    %v75 = vld [vmem:[#allocation3 + $0xc0] sm:$0xff]
    %v76 = vld [vmem:[#allocation3 + $0xc8] sm:$0xff]
    %v77 = vld [vmem:[#allocation3 + $0xd0] sm:$0xff]
    %v78 = vld [vmem:[#allocation3 + $0xd8] sm:$0xff]
    %v79 = vld [vmem:[#allocation3 + $0xe0] sm:$0xff]
    %v80 = vld [vmem:[#allocation3 + $0xe8] sm:$0xff]
    %v81 = vld [vmem:[#allocation3 + $0xf0] sm:$0xff]
    %v82 = vld [vmem:[#allocation3 + $0xf8] sm:$0xff]
    %v83 = vld [vmem:[%s2] sm:$0xff]
    %v84 = vld [vmem:[%s2 + $0x8] sm:$0xff]
    %v85 = vld [vmem:[%s2 + $0x10] sm:$0xff]
    %v86 = vld [vmem:[%s2 + $0x18] sm:$0xff]
    %v87 = vld [vmem:[%s2 + $0x20] sm:$0xff]
    %v88 = vld [vmem:[%s2 + $0x28] sm:$0xff]
    %v89 = vld [vmem:[%s2 + $0x30] sm:$0xff]
    %v90 = vld [vmem:[%s2 + $0x38] sm:$0xff]
    %92 = vset.pattern.permute.xlu0 0
    %93 = vperm.xlu0 %92, %v83
    %v94 = vpop.permute.xlu0 %93
    %97 = vset.pattern.permute.xlu0 0
    %98 = vperm.xlu0 %97, %v84
    %v99 = vpop.permute.xlu0 %98
    %102 = vset.pattern.permute.xlu0 0
    %103 = vperm.xlu0 %102, %v85
    %v104 = vpop.permute.xlu0 %103
    %107 = vset.pattern.permute.xlu0 0
    %108 = vperm.xlu0 %107, %v86
    %v109 = vpop.permute.xlu0 %108
    %112 = vset.pattern.permute.xlu0 0
    %113 = vperm.xlu0 %112, %v87
    %v114 = vpop.permute.xlu0 %113
    %117 = vset.pattern.permute.xlu0 0
    %118 = vperm.xlu0 %117, %v88
    %v119 = vpop.permute.xlu0 %118
    %122 = vset.pattern.permute.xlu0 0
    %123 = vperm.xlu0 %122, %v89
    %v124 = vpop.permute.xlu0 %123
    %127 = vset.pattern.permute.xlu0 0
    %128 = vperm.xlu0 %127, %v90
    %v129 = vpop.permute.xlu0 %128
    %v139 = vunpack.c.l.b16 %v43
    %v140 = vunpack.c.l.b16 %v44
    %v141 = vunpack.c.l.b16 %v45
    %v142 = vunpack.c.l.b16 %v46
    %v143 = vunpack.c.l.b16 %v47
    %v144 = vunpack.c.l.b16 %v48
    %v145 = vunpack.c.l.b16 %v49
    %v146 = vunpack.c.l.b16 %v50
    %v147 = vpack.c.b16 %v140, %v139
    %v148 = vpack.c.b16 %v142, %v141
    %v149 = vpack.c.b16 %v144, %v143
    %v150 = vpack.c.b16 %v146, %v145
    %v183 = vunpack.c.l.b16 %v51
    %v184 = vunpack.c.h.b16 %v51
    %v185 = vunpack.c.l.b16 %v52
    %v186 = vunpack.c.h.b16 %v52
    %v187 = vunpack.c.l.b16 %v53
    %v188 = vunpack.c.h.b16 %v53
    %v189 = vunpack.c.l.b16 %v54
    %v190 = vunpack.c.h.b16 %v54
    %v191 = vunpack.c.l.b16 %v55
    %v192 = vunpack.c.h.b16 %v55
    %v193 = vunpack.c.l.b16 %v56
    %v194 = vunpack.c.h.b16 %v56
    %v195 = vunpack.c.l.b16 %v57
    %v196 = vunpack.c.h.b16 %v57
    %v197 = vunpack.c.l.b16 %v58
    %v198 = vunpack.c.h.b16 %v58
    %v199 = vunpack.c.l.b16 %v59
    %v200 = vunpack.c.h.b16 %v59
    %v201 = vunpack.c.l.b16 %v60
    %v202 = vunpack.c.h.b16 %v60
    %v203 = vunpack.c.l.b16 %v61
    %v204 = vunpack.c.h.b16 %v61
    %v205 = vunpack.c.l.b16 %v62
    %v206 = vunpack.c.h.b16 %v62
    %v207 = vunpack.c.l.b16 %v63
    %v208 = vunpack.c.h.b16 %v63
    %v209 = vunpack.c.l.b16 %v64
    %v210 = vunpack.c.h.b16 %v64
    %v211 = vunpack.c.l.b16 %v65
    %v212 = vunpack.c.h.b16 %v65
    %v213 = vunpack.c.l.b16 %v66
    %v214 = vunpack.c.h.b16 %v66
    %v215 = vunpack.c.l.b16 %v67
    %v216 = vunpack.c.h.b16 %v67
    %v217 = vunpack.c.l.b16 %v68
    %v218 = vunpack.c.h.b16 %v68
    %v219 = vunpack.c.l.b16 %v69
    %v220 = vunpack.c.h.b16 %v69
    %v221 = vunpack.c.l.b16 %v70
    %v222 = vunpack.c.h.b16 %v70
    %v223 = vunpack.c.l.b16 %v71
    %v224 = vunpack.c.h.b16 %v71
    %v225 = vunpack.c.l.b16 %v72
    %v226 = vunpack.c.h.b16 %v72
    %v227 = vunpack.c.l.b16 %v73
    %v228 = vunpack.c.h.b16 %v73
    %v229 = vunpack.c.l.b16 %v74
    %v230 = vunpack.c.h.b16 %v74
    %v231 = vunpack.c.l.b16 %v75
    %v232 = vunpack.c.h.b16 %v75
    %v233 = vunpack.c.l.b16 %v76
    %v234 = vunpack.c.h.b16 %v76
    %v235 = vunpack.c.l.b16 %v77
    %v236 = vunpack.c.h.b16 %v77
    %v237 = vunpack.c.l.b16 %v78
    %v238 = vunpack.c.h.b16 %v78
    %v239 = vunpack.c.l.b16 %v79
    %v240 = vunpack.c.h.b16 %v79
    %v241 = vunpack.c.l.b16 %v80
    %v242 = vunpack.c.h.b16 %v80
    %v243 = vunpack.c.l.b16 %v81
    %v244 = vunpack.c.h.b16 %v81
    %v245 = vunpack.c.l.b16 %v82
    %v246 = vunpack.c.h.b16 %v82
    %v247 = vpack.c.b16 %v199, %v183
    %v248 = vpack.c.b16 %v200, %v184
    %v249 = vpack.c.b16 %v201, %v185
    %v250 = vpack.c.b16 %v202, %v186
    %v251 = vpack.c.b16 %v203, %v187
    %v252 = vpack.c.b16 %v204, %v188
    %v253 = vpack.c.b16 %v205, %v189
    %v254 = vpack.c.b16 %v206, %v190
    %v255 = vpack.c.b16 %v207, %v191
    %v256 = vpack.c.b16 %v208, %v192
    %v257 = vpack.c.b16 %v209, %v193
    %v258 = vpack.c.b16 %v210, %v194
    %v259 = vpack.c.b16 %v211, %v195
    %v260 = vpack.c.b16 %v212, %v196
    %v261 = vpack.c.b16 %v213, %v197
    %v262 = vpack.c.b16 %v214, %v198
    %v263 = vpack.c.b16 %v231, %v215
    %v264 = vpack.c.b16 %v232, %v216
    %v265 = vpack.c.b16 %v233, %v217
    %v266 = vpack.c.b16 %v234, %v218
    %v267 = vpack.c.b16 %v235, %v219
    %v268 = vpack.c.b16 %v236, %v220
    %v269 = vpack.c.b16 %v237, %v221
    %v270 = vpack.c.b16 %v238, %v222
    %v271 = vpack.c.b16 %v239, %v223
    %v272 = vpack.c.b16 %v240, %v224
    %v273 = vpack.c.b16 %v241, %v225
    %v274 = vpack.c.b16 %v242, %v226
    %v275 = vpack.c.b16 %v243, %v227
    %v276 = vpack.c.b16 %v244, %v228
    %v277 = vpack.c.b16 %v245, %v229
    %v278 = vpack.c.b16 %v246, %v230
    %vm311 = vcmask 261120
    %v313 = vsel %vm311, %v147, 0
    %v316 = vsel %vm311, %v148, 0
    %v319 = vsel %vm311, %v149, 0
    %v322 = vsel %vm311, %v150, 0
    %324 = vmatprep.subr.bf16.mxu0 0
    %325 = vmatpush1.bf16.msra.mxu0 0
    %326 = vmatprep.subr.bf16.mxu0 0
    %327 = vmatpush1.bf16.msra.mxu0 0
    %328 = vmatprep.subr.bf16.mxu0 0
    %329 = vmatpush1.bf16.msra.mxu0 0
    %330 = vmatprep.subr.bf16.mxu0 0
    %331 = vmatpush1.bf16.msra.mxu0 0
    %332 = vmatprep.subr.bf16.mxu0 0
    %333 = vmatpush1.bf16.msra.mxu0 0
    %334 = vmatprep.subr.bf16.mxu0 0
    %335 = vmatpush1.bf16.msra.mxu0 0
    %336 = vmatprep.subr.bf16.mxu0 %v264
    %337 = vmatpush1.bf16.msra.mxu0 %v263
    %338 = vmatprep.subr.bf16.mxu0 %v248
    %339 = vmatpush1.bf16.msra.mxu0 %v247
    %340 = vmatprep.subr.bf16.mxu0 0
    %341 = vmatpush2.bf16.msra.mxu0 0
    %342 = vmatprep.subr.bf16.mxu0 0
    %343 = vmatpush2.bf16.msra.mxu0 0
    %344 = vmatprep.subr.bf16.mxu0 0
    %345 = vmatpush2.bf16.msra.mxu0 0
    %346 = vmatprep.subr.bf16.mxu0 0
    %347 = vmatpush2.bf16.msra.mxu0 0
    %348 = vmatprep.subr.bf16.mxu0 0
    %349 = vmatpush2.bf16.msra.mxu0 0
    %350 = vmatprep.subr.bf16.mxu0 0
    %351 = vmatpush2.bf16.msra.mxu0 0
    %352 = vmatprep.subr.bf16.mxu0 0
    %353 = vmatpush2.bf16.msra.mxu0 0
    %354 = vmatprep.subr.bf16.mxu0 0
    %355 = vmatpush2.bf16.msra.mxu0 0
    %356 = vmatprep.mubr.bf16.mxu0 0
    %357 = vmatmul.mubr.bf16.gmra.mxu0 %v313
    %v358 = vpop.f32.mrf.mxu0
    %v359 = vadd.f32 %v94, %v358
    %v360 = vpop.f32.mrf.mxu0
    %v361 = vadd.f32 %v94, %v360
    %v362 = vpop.f32.mrf.mxu0
    %v363 = vadd.f32 %v99, %v362
    %v364 = vpop.f32.mrf.mxu0
    %v365 = vadd.f32 %v99, %v364
    %366 = vmatprep.mubr.bf16.mxu0 0
    %367 = vmatmul.mubr.bf16.gmra.mxu0 %v316
    %v368 = vpop.f32.mrf.mxu0
    %v369 = vadd.f32 %v104, %v368
    %v370 = vpop.f32.mrf.mxu0
    %v371 = vadd.f32 %v104, %v370
    %v372 = vpop.f32.mrf.mxu0
    %v373 = vadd.f32 %v109, %v372
    %v374 = vpop.f32.mrf.mxu0
    %v375 = vadd.f32 %v109, %v374
    %376 = vmatprep.mubr.bf16.mxu0 0
    %377 = vmatmul.mubr.bf16.gmra.mxu0 %v319
    %v378 = vpop.f32.mrf.mxu0
    %v379 = vadd.f32 %v114, %v378
    %v380 = vpop.f32.mrf.mxu0
    %v381 = vadd.f32 %v114, %v380
    %v382 = vpop.f32.mrf.mxu0
    %v383 = vadd.f32 %v119, %v382
    %v384 = vpop.f32.mrf.mxu0
    %v385 = vadd.f32 %v119, %v384
    %386 = vmatprep.mubr.bf16.mxu0 0
    %387 = vmatmul.mubr.bf16.gmra.mxu0 %v322
    %v388 = vpop.f32.mrf.mxu0
    %v389 = vadd.f32 %v124, %v388
    %v390 = vpop.f32.mrf.mxu0
    %v391 = vadd.f32 %v124, %v390
    %v392 = vpop.f32.mrf.mxu0
    %v393 = vadd.f32 %v129, %v392
    %v394 = vpop.f32.mrf.mxu0
    %v395 = vadd.f32 %v129, %v394
    %396 = vdwg.mxu0
    %397 = vmatprep.subr.bf16.mxu0 0
    %398 = vmatpush1.bf16.msra.mxu0 0
    %399 = vmatprep.subr.bf16.mxu0 0
    %400 = vmatpush1.bf16.msra.mxu0 0
    %401 = vmatprep.subr.bf16.mxu0 0
    %402 = vmatpush1.bf16.msra.mxu0 0
    %403 = vmatprep.subr.bf16.mxu0 0
    %404 = vmatpush1.bf16.msra.mxu0 0
    %405 = vmatprep.subr.bf16.mxu0 0
    %406 = vmatpush1.bf16.msra.mxu0 0
    %407 = vmatprep.subr.bf16.mxu0 0
    %408 = vmatpush1.bf16.msra.mxu0 0
    %409 = vmatprep.subr.bf16.mxu0 %v266
    %410 = vmatpush1.bf16.msra.mxu0 %v265
    %411 = vmatprep.subr.bf16.mxu0 %v250
    %412 = vmatpush1.bf16.msra.mxu0 %v249
    %413 = vmatprep.subr.bf16.mxu0 0
    %414 = vmatpush2.bf16.msra.mxu0 0
    %415 = vmatprep.subr.bf16.mxu0 0
    %416 = vmatpush2.bf16.msra.mxu0 0
    %417 = vmatprep.subr.bf16.mxu0 0
    %418 = vmatpush2.bf16.msra.mxu0 0
    %419 = vmatprep.subr.bf16.mxu0 0
    %420 = vmatpush2.bf16.msra.mxu0 0
    %421 = vmatprep.subr.bf16.mxu0 0
    %422 = vmatpush2.bf16.msra.mxu0 0
    %423 = vmatprep.subr.bf16.mxu0 0
    %424 = vmatpush2.bf16.msra.mxu0 0
    %425 = vmatprep.subr.bf16.mxu0 0
    %426 = vmatpush2.bf16.msra.mxu0 0
    %427 = vmatprep.subr.bf16.mxu0 0
    %428 = vmatpush2.bf16.msra.mxu0 0
    %429 = vmatprep.mubr.bf16.mxu0 0
    %430 = vmatmul.mubr.bf16.gmra.mxu0 %v313
    %v431 = vpop.f32.mrf.mxu0
    %v432 = vadd.f32 %v94, %v431
    %v433 = vpop.f32.mrf.mxu0
    %v434 = vadd.f32 %v94, %v433
    %v435 = vpop.f32.mrf.mxu0
    %v436 = vadd.f32 %v99, %v435
    %v437 = vpop.f32.mrf.mxu0
    %v438 = vadd.f32 %v99, %v437
    %439 = vmatprep.mubr.bf16.mxu0 0
    %440 = vmatmul.mubr.bf16.gmra.mxu0 %v316
    %v441 = vpop.f32.mrf.mxu0
    %v442 = vadd.f32 %v104, %v441
    %v443 = vpop.f32.mrf.mxu0
    %v444 = vadd.f32 %v104, %v443
    %v445 = vpop.f32.mrf.mxu0
    %v446 = vadd.f32 %v109, %v445
    %v447 = vpop.f32.mrf.mxu0
    %v448 = vadd.f32 %v109, %v447
    %449 = vmatprep.mubr.bf16.mxu0 0
    %450 = vmatmul.mubr.bf16.gmra.mxu0 %v319
    %v451 = vpop.f32.mrf.mxu0
    %v452 = vadd.f32 %v114, %v451
    %v453 = vpop.f32.mrf.mxu0
    %v454 = vadd.f32 %v114, %v453
    %v455 = vpop.f32.mrf.mxu0
    %v456 = vadd.f32 %v119, %v455
    %v457 = vpop.f32.mrf.mxu0
    %v458 = vadd.f32 %v119, %v457
    %459 = vmatprep.mubr.bf16.mxu0 0
    %460 = vmatmul.mubr.bf16.gmra.mxu0 %v322
    %v461 = vpop.f32.mrf.mxu0
    %v462 = vadd.f32 %v124, %v461
    %v463 = vpop.f32.mrf.mxu0
    %v464 = vadd.f32 %v124, %v463
    %v465 = vpop.f32.mrf.mxu0
    %v466 = vadd.f32 %v129, %v465
    %v467 = vpop.f32.mrf.mxu0
    %v468 = vadd.f32 %v129, %v467
    %469 = vdwg.mxu0
    %470 = vmatprep.subr.bf16.mxu0 0
    %471 = vmatpush1.bf16.msra.mxu0 0
    %472 = vmatprep.subr.bf16.mxu0 0
    %473 = vmatpush1.bf16.msra.mxu0 0
    %474 = vmatprep.subr.bf16.mxu0 0
    %475 = vmatpush1.bf16.msra.mxu0 0
    %476 = vmatprep.subr.bf16.mxu0 0
    %477 = vmatpush1.bf16.msra.mxu0 0
    %478 = vmatprep.subr.bf16.mxu0 0
    %479 = vmatpush1.bf16.msra.mxu0 0
    %480 = vmatprep.subr.bf16.mxu0 0
    %481 = vmatpush1.bf16.msra.mxu0 0
    %482 = vmatprep.subr.bf16.mxu0 %v268
    %483 = vmatpush1.bf16.msra.mxu0 %v267
    %484 = vmatprep.subr.bf16.mxu0 %v252
    %485 = vmatpush1.bf16.msra.mxu0 %v251
    %486 = vmatprep.subr.bf16.mxu0 0
    %487 = vmatpush2.bf16.msra.mxu0 0
    %488 = vmatprep.subr.bf16.mxu0 0
    %489 = vmatpush2.bf16.msra.mxu0 0
    %490 = vmatprep.subr.bf16.mxu0 0
    %491 = vmatpush2.bf16.msra.mxu0 0
    %492 = vmatprep.subr.bf16.mxu0 0
    %493 = vmatpush2.bf16.msra.mxu0 0
    %494 = vmatprep.subr.bf16.mxu0 0
    %495 = vmatpush2.bf16.msra.mxu0 0
    %496 = vmatprep.subr.bf16.mxu0 0
    %497 = vmatpush2.bf16.msra.mxu0 0
    %498 = vmatprep.subr.bf16.mxu0 0
    %499 = vmatpush2.bf16.msra.mxu0 0
    %500 = vmatprep.subr.bf16.mxu0 0
    %501 = vmatpush2.bf16.msra.mxu0 0
    %502 = vmatprep.mubr.bf16.mxu0 0
    %503 = vmatmul.mubr.bf16.gmra.mxu0 %v313
    %v504 = vpop.f32.mrf.mxu0
    %v505 = vadd.f32 %v94, %v504
    %v506 = vpop.f32.mrf.mxu0
    %v507 = vadd.f32 %v94, %v506
    %v508 = vpop.f32.mrf.mxu0
    %v509 = vadd.f32 %v99, %v508
    %v510 = vpop.f32.mrf.mxu0
    %v511 = vadd.f32 %v99, %v510
    %512 = vmatprep.mubr.bf16.mxu0 0
    %513 = vmatmul.mubr.bf16.gmra.mxu0 %v316
    %v514 = vpop.f32.mrf.mxu0
    %v515 = vadd.f32 %v104, %v514
    %v516 = vpop.f32.mrf.mxu0
    %v517 = vadd.f32 %v104, %v516
    %v518 = vpop.f32.mrf.mxu0
    %v519 = vadd.f32 %v109, %v518
    %v520 = vpop.f32.mrf.mxu0
    %v521 = vadd.f32 %v109, %v520
    %522 = vmatprep.mubr.bf16.mxu0 0
    %523 = vmatmul.mubr.bf16.gmra.mxu0 %v319
    %v524 = vpop.f32.mrf.mxu0
    %v525 = vadd.f32 %v114, %v524
    %v526 = vpop.f32.mrf.mxu0
    %v527 = vadd.f32 %v114, %v526
    %v528 = vpop.f32.mrf.mxu0
    %v529 = vadd.f32 %v119, %v528
    %v530 = vpop.f32.mrf.mxu0
    %v531 = vadd.f32 %v119, %v530
    %532 = vmatprep.mubr.bf16.mxu0 0
    %533 = vmatmul.mubr.bf16.gmra.mxu0 %v322
    %v534 = vpop.f32.mrf.mxu0
    %v535 = vadd.f32 %v124, %v534
    %v536 = vpop.f32.mrf.mxu0
    %v537 = vadd.f32 %v124, %v536
    %v538 = vpop.f32.mrf.mxu0
    %v539 = vadd.f32 %v129, %v538
    %v540 = vpop.f32.mrf.mxu0
    %v541 = vadd.f32 %v129, %v540
    %542 = vdwg.mxu0
    %543 = vmatprep.subr.bf16.mxu0 0
    %544 = vmatpush1.bf16.msra.mxu0 0
    %545 = vmatprep.subr.bf16.mxu0 0
    %546 = vmatpush1.bf16.msra.mxu0 0
    %547 = vmatprep.subr.bf16.mxu0 0
    %548 = vmatpush1.bf16.msra.mxu0 0
    %549 = vmatprep.subr.bf16.mxu0 0
    %550 = vmatpush1.bf16.msra.mxu0 0
    %551 = vmatprep.subr.bf16.mxu0 0
    %552 = vmatpush1.bf16.msra.mxu0 0
    %553 = vmatprep.subr.bf16.mxu0 0
    %554 = vmatpush1.bf16.msra.mxu0 0
    %555 = vmatprep.subr.bf16.mxu0 %v270
    %556 = vmatpush1.bf16.msra.mxu0 %v269
    %557 = vmatprep.subr.bf16.mxu0 %v254
    %558 = vmatpush1.bf16.msra.mxu0 %v253
    %559 = vmatprep.subr.bf16.mxu0 0
    %560 = vmatpush2.bf16.msra.mxu0 0
    %561 = vmatprep.subr.bf16.mxu0 0
    %562 = vmatpush2.bf16.msra.mxu0 0
    %563 = vmatprep.subr.bf16.mxu0 0
    %564 = vmatpush2.bf16.msra.mxu0 0
    %565 = vmatprep.subr.bf16.mxu0 0
    %566 = vmatpush2.bf16.msra.mxu0 0
    %567 = vmatprep.subr.bf16.mxu0 0
    %568 = vmatpush2.bf16.msra.mxu0 0
    %569 = vmatprep.subr.bf16.mxu0 0
    %570 = vmatpush2.bf16.msra.mxu0 0
    %571 = vmatprep.subr.bf16.mxu0 0
    %572 = vmatpush2.bf16.msra.mxu0 0
    %573 = vmatprep.subr.bf16.mxu0 0
    %574 = vmatpush2.bf16.msra.mxu0 0
    %575 = vmatprep.mubr.bf16.mxu0 0
    %576 = vmatmul.mubr.bf16.gmra.mxu0 %v313
    %v577 = vpop.f32.mrf.mxu0
    %v578 = vadd.f32 %v94, %v577
    %v579 = vpop.f32.mrf.mxu0
    %v580 = vadd.f32 %v94, %v579
    %v581 = vpop.f32.mrf.mxu0
    %v582 = vadd.f32 %v99, %v581
    %v583 = vpop.f32.mrf.mxu0
    %v584 = vadd.f32 %v99, %v583
    %585 = vmatprep.mubr.bf16.mxu0 0
    %586 = vmatmul.mubr.bf16.gmra.mxu0 %v316
    %v587 = vpop.f32.mrf.mxu0
    %v588 = vadd.f32 %v104, %v587
    %v589 = vpop.f32.mrf.mxu0
    %v590 = vadd.f32 %v104, %v589
    %v591 = vpop.f32.mrf.mxu0
    %v592 = vadd.f32 %v109, %v591
    %v593 = vpop.f32.mrf.mxu0
    %v594 = vadd.f32 %v109, %v593
    %595 = vmatprep.mubr.bf16.mxu0 0
    %596 = vmatmul.mubr.bf16.gmra.mxu0 %v319
    %v597 = vpop.f32.mrf.mxu0
    %v598 = vadd.f32 %v114, %v597
    %v599 = vpop.f32.mrf.mxu0
    %v600 = vadd.f32 %v114, %v599
    %v601 = vpop.f32.mrf.mxu0
    %v602 = vadd.f32 %v119, %v601
    %v603 = vpop.f32.mrf.mxu0
    %v604 = vadd.f32 %v119, %v603
    %605 = vmatprep.mubr.bf16.mxu0 0
    %606 = vmatmul.mubr.bf16.gmra.mxu0 %v322
    %v607 = vpop.f32.mrf.mxu0
    %v608 = vadd.f32 %v124, %v607
    %v609 = vpop.f32.mrf.mxu0
    %v610 = vadd.f32 %v124, %v609
    %v611 = vpop.f32.mrf.mxu0
    %v612 = vadd.f32 %v129, %v611
    %v613 = vpop.f32.mrf.mxu0
    %v614 = vadd.f32 %v129, %v613
    %615 = vdwg.mxu0
    %616 = vmatprep.subr.bf16.mxu0 0
    %617 = vmatpush1.bf16.msra.mxu0 0
    %618 = vmatprep.subr.bf16.mxu0 0
    %619 = vmatpush1.bf16.msra.mxu0 0
    %620 = vmatprep.subr.bf16.mxu0 0
    %621 = vmatpush1.bf16.msra.mxu0 0
    %622 = vmatprep.subr.bf16.mxu0 0
    %623 = vmatpush1.bf16.msra.mxu0 0
    %624 = vmatprep.subr.bf16.mxu0 0
    %625 = vmatpush1.bf16.msra.mxu0 0
    %626 = vmatprep.subr.bf16.mxu0 0
    %627 = vmatpush1.bf16.msra.mxu0 0
    %628 = vmatprep.subr.bf16.mxu0 %v272
    %629 = vmatpush1.bf16.msra.mxu0 %v271
    %630 = vmatprep.subr.bf16.mxu0 %v256
    %631 = vmatpush1.bf16.msra.mxu0 %v255
    %632 = vmatprep.subr.bf16.mxu0 0
    %633 = vmatpush2.bf16.msra.mxu0 0
    %634 = vmatprep.subr.bf16.mxu0 0
    %635 = vmatpush2.bf16.msra.mxu0 0
    %636 = vmatprep.subr.bf16.mxu0 0
    %637 = vmatpush2.bf16.msra.mxu0 0
    %638 = vmatprep.subr.bf16.mxu0 0
    %639 = vmatpush2.bf16.msra.mxu0 0
    %640 = vmatprep.subr.bf16.mxu0 0
    %641 = vmatpush2.bf16.msra.mxu0 0
    %642 = vmatprep.subr.bf16.mxu0 0
    %643 = vmatpush2.bf16.msra.mxu0 0
    %644 = vmatprep.subr.bf16.mxu0 0
    %645 = vmatpush2.bf16.msra.mxu0 0
    %646 = vmatprep.subr.bf16.mxu0 0
    %647 = vmatpush2.bf16.msra.mxu0 0
    %648 = vmatprep.mubr.bf16.mxu0 0
    %649 = vmatmul.mubr.bf16.gmra.mxu0 %v313
    %v650 = vpop.f32.mrf.mxu0
    %v651 = vadd.f32 %v94, %v650
    %v652 = vpop.f32.mrf.mxu0
    %v653 = vadd.f32 %v94, %v652
    %v654 = vpop.f32.mrf.mxu0
    %v655 = vadd.f32 %v99, %v654
    %v656 = vpop.f32.mrf.mxu0
    %v657 = vadd.f32 %v99, %v656
    %658 = vmatprep.mubr.bf16.mxu0 0
    %659 = vmatmul.mubr.bf16.gmra.mxu0 %v316
    %v660 = vpop.f32.mrf.mxu0
    %v661 = vadd.f32 %v104, %v660
    %v662 = vpop.f32.mrf.mxu0
    %v663 = vadd.f32 %v104, %v662
    %v664 = vpop.f32.mrf.mxu0
    %v665 = vadd.f32 %v109, %v664
    %v666 = vpop.f32.mrf.mxu0
    %v667 = vadd.f32 %v109, %v666
    %668 = vmatprep.mubr.bf16.mxu0 0
    %669 = vmatmul.mubr.bf16.gmra.mxu0 %v319
    %v670 = vpop.f32.mrf.mxu0
    %v671 = vadd.f32 %v114, %v670
    %v672 = vpop.f32.mrf.mxu0
    %v673 = vadd.f32 %v114, %v672
    %v674 = vpop.f32.mrf.mxu0
    %v675 = vadd.f32 %v119, %v674
    %v676 = vpop.f32.mrf.mxu0
    %v677 = vadd.f32 %v119, %v676
    %678 = vmatprep.mubr.bf16.mxu0 0
    %679 = vmatmul.mubr.bf16.gmra.mxu0 %v322
    %v680 = vpop.f32.mrf.mxu0
    %v681 = vadd.f32 %v124, %v680
    %v682 = vpop.f32.mrf.mxu0
    %v683 = vadd.f32 %v124, %v682
    %v684 = vpop.f32.mrf.mxu0
    %v685 = vadd.f32 %v129, %v684
    %v686 = vpop.f32.mrf.mxu0
    %v687 = vadd.f32 %v129, %v686
    %688 = vdwg.mxu0
    %689 = vmatprep.subr.bf16.mxu0 0
    %690 = vmatpush1.bf16.msra.mxu0 0
    %691 = vmatprep.subr.bf16.mxu0 0
    %692 = vmatpush1.bf16.msra.mxu0 0
    %693 = vmatprep.subr.bf16.mxu0 0
    %694 = vmatpush1.bf16.msra.mxu0 0
    %695 = vmatprep.subr.bf16.mxu0 0
    %696 = vmatpush1.bf16.msra.mxu0 0
    %697 = vmatprep.subr.bf16.mxu0 0
    %698 = vmatpush1.bf16.msra.mxu0 0
    %699 = vmatprep.subr.bf16.mxu0 0
    %700 = vmatpush1.bf16.msra.mxu0 0
    %701 = vmatprep.subr.bf16.mxu0 %v274
    %702 = vmatpush1.bf16.msra.mxu0 %v273
    %703 = vmatprep.subr.bf16.mxu0 %v258
    %704 = vmatpush1.bf16.msra.mxu0 %v257
    %705 = vmatprep.subr.bf16.mxu0 0
    %706 = vmatpush2.bf16.msra.mxu0 0
    %707 = vmatprep.subr.bf16.mxu0 0
    %708 = vmatpush2.bf16.msra.mxu0 0
    %709 = vmatprep.subr.bf16.mxu0 0
    %710 = vmatpush2.bf16.msra.mxu0 0
    %711 = vmatprep.subr.bf16.mxu0 0
    %712 = vmatpush2.bf16.msra.mxu0 0
    %713 = vmatprep.subr.bf16.mxu0 0
    %714 = vmatpush2.bf16.msra.mxu0 0
    %715 = vmatprep.subr.bf16.mxu0 0
    %716 = vmatpush2.bf16.msra.mxu0 0
    %717 = vmatprep.subr.bf16.mxu0 0
    %718 = vmatpush2.bf16.msra.mxu0 0
    %719 = vmatprep.subr.bf16.mxu0 0
    %720 = vmatpush2.bf16.msra.mxu0 0
    %721 = vmatprep.mubr.bf16.mxu0 0
    %722 = vmatmul.mubr.bf16.gmra.mxu0 %v313
    %v723 = vpop.f32.mrf.mxu0
    %v724 = vadd.f32 %v94, %v723
    %v725 = vpop.f32.mrf.mxu0
    %v726 = vadd.f32 %v94, %v725
    %v727 = vpop.f32.mrf.mxu0
    %v728 = vadd.f32 %v99, %v727
    %v729 = vpop.f32.mrf.mxu0
    %v730 = vadd.f32 %v99, %v729
    %731 = vmatprep.mubr.bf16.mxu0 0
    %732 = vmatmul.mubr.bf16.gmra.mxu0 %v316
    %v733 = vpop.f32.mrf.mxu0
    %v734 = vadd.f32 %v104, %v733
    %v735 = vpop.f32.mrf.mxu0
    %v736 = vadd.f32 %v104, %v735
    %v737 = vpop.f32.mrf.mxu0
    %v738 = vadd.f32 %v109, %v737
    %v739 = vpop.f32.mrf.mxu0
    %v740 = vadd.f32 %v109, %v739
    %741 = vmatprep.mubr.bf16.mxu0 0
    %742 = vmatmul.mubr.bf16.gmra.mxu0 %v319
    %v743 = vpop.f32.mrf.mxu0
    %v744 = vadd.f32 %v114, %v743
    %v745 = vpop.f32.mrf.mxu0
    %v746 = vadd.f32 %v114, %v745
    %v747 = vpop.f32.mrf.mxu0
    %v748 = vadd.f32 %v119, %v747
    %v749 = vpop.f32.mrf.mxu0
    %v750 = vadd.f32 %v119, %v749
    %751 = vmatprep.mubr.bf16.mxu0 0
    %752 = vmatmul.mubr.bf16.gmra.mxu0 %v322
    %v753 = vpop.f32.mrf.mxu0
    %v754 = vadd.f32 %v124, %v753
    %v755 = vpop.f32.mrf.mxu0
    %v756 = vadd.f32 %v124, %v755
    %v757 = vpop.f32.mrf.mxu0
    %v758 = vadd.f32 %v129, %v757
    %v759 = vpop.f32.mrf.mxu0
    %v760 = vadd.f32 %v129, %v759
    %761 = vdwg.mxu0
    %762 = vmatprep.subr.bf16.mxu0 0
    %763 = vmatpush1.bf16.msra.mxu0 0
    %764 = vmatprep.subr.bf16.mxu0 0
    %765 = vmatpush1.bf16.msra.mxu0 0
    %766 = vmatprep.subr.bf16.mxu0 0
    %767 = vmatpush1.bf16.msra.mxu0 0
    %768 = vmatprep.subr.bf16.mxu0 0
    %769 = vmatpush1.bf16.msra.mxu0 0
    %770 = vmatprep.subr.bf16.mxu0 0
    %771 = vmatpush1.bf16.msra.mxu0 0
    %772 = vmatprep.subr.bf16.mxu0 0
    %773 = vmatpush1.bf16.msra.mxu0 0
    %774 = vmatprep.subr.bf16.mxu0 %v276
    %775 = vmatpush1.bf16.msra.mxu0 %v275
    %776 = vmatprep.subr.bf16.mxu0 %v260
    %777 = vmatpush1.bf16.msra.mxu0 %v259
    %778 = vmatprep.subr.bf16.mxu0 0
    %779 = vmatpush2.bf16.msra.mxu0 0
    %780 = vmatprep.subr.bf16.mxu0 0
    %781 = vmatpush2.bf16.msra.mxu0 0
    %782 = vmatprep.subr.bf16.mxu0 0
    %783 = vmatpush2.bf16.msra.mxu0 0
    %784 = vmatprep.subr.bf16.mxu0 0
    %785 = vmatpush2.bf16.msra.mxu0 0
    %786 = vmatprep.subr.bf16.mxu0 0
    %787 = vmatpush2.bf16.msra.mxu0 0
    %788 = vmatprep.subr.bf16.mxu0 0
    %789 = vmatpush2.bf16.msra.mxu0 0
    %790 = vmatprep.subr.bf16.mxu0 0
    %791 = vmatpush2.bf16.msra.mxu0 0
    %792 = vmatprep.subr.bf16.mxu0 0
    %793 = vmatpush2.bf16.msra.mxu0 0
    %794 = vmatprep.mubr.bf16.mxu0 0
    %795 = vmatmul.mubr.bf16.gmra.mxu0 %v313
    %v796 = vpop.f32.mrf.mxu0
    %v797 = vadd.f32 %v94, %v796
    %v798 = vpop.f32.mrf.mxu0
    %v799 = vadd.f32 %v94, %v798
    %v800 = vpop.f32.mrf.mxu0
    %v801 = vadd.f32 %v99, %v800
    %v802 = vpop.f32.mrf.mxu0
    %v803 = vadd.f32 %v99, %v802
    %804 = vmatprep.mubr.bf16.mxu0 0
    %805 = vmatmul.mubr.bf16.gmra.mxu0 %v316
    %v806 = vpop.f32.mrf.mxu0
    %v807 = vadd.f32 %v104, %v806
    %v808 = vpop.f32.mrf.mxu0
    %v809 = vadd.f32 %v104, %v808
    %v810 = vpop.f32.mrf.mxu0
    %v811 = vadd.f32 %v109, %v810
    %v812 = vpop.f32.mrf.mxu0
    %v813 = vadd.f32 %v109, %v812
    %814 = vmatprep.mubr.bf16.mxu0 0
    %815 = vmatmul.mubr.bf16.gmra.mxu0 %v319
    %v816 = vpop.f32.mrf.mxu0
    %v817 = vadd.f32 %v114, %v816
    %v818 = vpop.f32.mrf.mxu0
    %v819 = vadd.f32 %v114, %v818
    %v820 = vpop.f32.mrf.mxu0
    %v821 = vadd.f32 %v119, %v820
    %v822 = vpop.f32.mrf.mxu0
    %v823 = vadd.f32 %v119, %v822
    %824 = vmatprep.mubr.bf16.mxu0 0
    %825 = vmatmul.mubr.bf16.gmra.mxu0 %v322
    %v826 = vpop.f32.mrf.mxu0
    %v827 = vadd.f32 %v124, %v826
    %v828 = vpop.f32.mrf.mxu0
    %v829 = vadd.f32 %v124, %v828
    %v830 = vpop.f32.mrf.mxu0
    %v831 = vadd.f32 %v129, %v830
    %v832 = vpop.f32.mrf.mxu0
    %v833 = vadd.f32 %v129, %v832
    %834 = vdwg.mxu0
    %835 = vmatprep.subr.bf16.mxu0 0
    %836 = vmatpush1.bf16.msra.mxu0 0
    %837 = vmatprep.subr.bf16.mxu0 0
    %838 = vmatpush1.bf16.msra.mxu0 0
    %839 = vmatprep.subr.bf16.mxu0 0
    %840 = vmatpush1.bf16.msra.mxu0 0
    %841 = vmatprep.subr.bf16.mxu0 0
    %842 = vmatpush1.bf16.msra.mxu0 0
    %843 = vmatprep.subr.bf16.mxu0 0
    %844 = vmatpush1.bf16.msra.mxu0 0
    %845 = vmatprep.subr.bf16.mxu0 0
    %846 = vmatpush1.bf16.msra.mxu0 0
    %847 = vmatprep.subr.bf16.mxu0 %v278
    %848 = vmatpush1.bf16.msra.mxu0 %v277
    %849 = vmatprep.subr.bf16.mxu0 %v262
    %850 = vmatpush1.bf16.msra.mxu0 %v261
    %851 = vmatprep.subr.bf16.mxu0 0
    %852 = vmatpush2.bf16.msra.mxu0 0
    %853 = vmatprep.subr.bf16.mxu0 0
    %854 = vmatpush2.bf16.msra.mxu0 0
    %855 = vmatprep.subr.bf16.mxu0 0
    %856 = vmatpush2.bf16.msra.mxu0 0
    %857 = vmatprep.subr.bf16.mxu0 0
    %858 = vmatpush2.bf16.msra.mxu0 0
    %859 = vmatprep.subr.bf16.mxu0 0
    %860 = vmatpush2.bf16.msra.mxu0 0
    %861 = vmatprep.subr.bf16.mxu0 0
    %862 = vmatpush2.bf16.msra.mxu0 0
    %863 = vmatprep.subr.bf16.mxu0 0
    %864 = vmatpush2.bf16.msra.mxu0 0
    %865 = vmatprep.subr.bf16.mxu0 0
    %866 = vmatpush2.bf16.msra.mxu0 0
    %867 = vmatprep.mubr.bf16.mxu0 0
    %868 = vmatmul.mubr.bf16.gmra.mxu0 %v313
    %v869 = vpop.f32.mrf.mxu0
    %v870 = vadd.f32 %v94, %v869
    %v871 = vpop.f32.mrf.mxu0
    %v872 = vadd.f32 %v94, %v871
    %v873 = vpop.f32.mrf.mxu0
    %v874 = vadd.f32 %v99, %v873
    %v875 = vpop.f32.mrf.mxu0
    %v876 = vadd.f32 %v99, %v875
    %877 = vmatprep.mubr.bf16.mxu0 0
    %878 = vmatmul.mubr.bf16.gmra.mxu0 %v316
    %v879 = vpop.f32.mrf.mxu0
    %v880 = vadd.f32 %v104, %v879
    %v881 = vpop.f32.mrf.mxu0
    %v882 = vadd.f32 %v104, %v881
    %v883 = vpop.f32.mrf.mxu0
    %v884 = vadd.f32 %v109, %v883
    %v885 = vpop.f32.mrf.mxu0
    %v886 = vadd.f32 %v109, %v885
    %887 = vmatprep.mubr.bf16.mxu0 0
    %888 = vmatmul.mubr.bf16.gmra.mxu0 %v319
    %v889 = vpop.f32.mrf.mxu0
    %v890 = vadd.f32 %v114, %v889
    %v891 = vpop.f32.mrf.mxu0
    %v892 = vadd.f32 %v114, %v891
    %v893 = vpop.f32.mrf.mxu0
    %v894 = vadd.f32 %v119, %v893
    %v895 = vpop.f32.mrf.mxu0
    %v896 = vadd.f32 %v119, %v895
    %897 = vmatprep.mubr.bf16.mxu0 0
    %898 = vmatmul.mubr.bf16.gmra.mxu0 %v322
    %v899 = vpop.f32.mrf.mxu0
    %v900 = vadd.f32 %v124, %v899
    %v901 = vpop.f32.mrf.mxu0
    %v902 = vadd.f32 %v124, %v901
    %v903 = vpop.f32.mrf.mxu0
    %v904 = vadd.f32 %v129, %v903
    %v905 = vpop.f32.mrf.mxu0
    %v906 = vadd.f32 %v129, %v905
    %907 = vdwg.mxu0
    %v908 = vmax.f32 %v359, 0.0
    %v909 = vmax.f32 %v361, 0.0
    %v910 = vmax.f32 %v432, 0.0
    %v911 = vmax.f32 %v434, 0.0
    %v912 = vmax.f32 %v505, 0.0
    %v913 = vmax.f32 %v507, 0.0
    %v914 = vmax.f32 %v578, 0.0
    %v915 = vmax.f32 %v580, 0.0
    %v916 = vmax.f32 %v651, 0.0
    %v917 = vmax.f32 %v653, 0.0
    %v918 = vmax.f32 %v724, 0.0
    %v919 = vmax.f32 %v726, 0.0
    %v920 = vmax.f32 %v797, 0.0
    %v921 = vmax.f32 %v799, 0.0
    %v922 = vmax.f32 %v870, 0.0
    %v923 = vmax.f32 %v872, 0.0
    %v924 = vmax.f32 %v363, 0.0
    %v925 = vmax.f32 %v365, 0.0
    %v926 = vmax.f32 %v436, 0.0
    %v927 = vmax.f32 %v438, 0.0
    %v928 = vmax.f32 %v509, 0.0
    %v929 = vmax.f32 %v511, 0.0
    %v930 = vmax.f32 %v582, 0.0
    %v931 = vmax.f32 %v584, 0.0
    %v932 = vmax.f32 %v655, 0.0
    %v933 = vmax.f32 %v657, 0.0
    %v934 = vmax.f32 %v728, 0.0
    %v935 = vmax.f32 %v730, 0.0
    %v936 = vmax.f32 %v801, 0.0
    %v937 = vmax.f32 %v803, 0.0
    %v938 = vmax.f32 %v874, 0.0
    %v939 = vmax.f32 %v876, 0.0
    %v940 = vmax.f32 %v369, 0.0
    %v941 = vmax.f32 %v371, 0.0
    %v942 = vmax.f32 %v442, 0.0
    %v943 = vmax.f32 %v444, 0.0
    %v944 = vmax.f32 %v515, 0.0
    %v945 = vmax.f32 %v517, 0.0
    %v946 = vmax.f32 %v588, 0.0
    %v947 = vmax.f32 %v590, 0.0
    %v948 = vmax.f32 %v661, 0.0
    %v949 = vmax.f32 %v663, 0.0
    %v950 = vmax.f32 %v734, 0.0
    %v951 = vmax.f32 %v736, 0.0
    %v952 = vmax.f32 %v807, 0.0
    %v953 = vmax.f32 %v809, 0.0
    %v954 = vmax.f32 %v880, 0.0
    %v955 = vmax.f32 %v882, 0.0
    %v956 = vmax.f32 %v373, 0.0
    %v957 = vmax.f32 %v375, 0.0
    %v958 = vmax.f32 %v446, 0.0
    %v959 = vmax.f32 %v448, 0.0
    %v960 = vmax.f32 %v519, 0.0
    %v961 = vmax.f32 %v521, 0.0
    %v962 = vmax.f32 %v592, 0.0
    %v963 = vmax.f32 %v594, 0.0
    %v964 = vmax.f32 %v665, 0.0
    %v965 = vmax.f32 %v667, 0.0
    %v966 = vmax.f32 %v738, 0.0
    %v967 = vmax.f32 %v740, 0.0
    %v968 = vmax.f32 %v811, 0.0
    %v969 = vmax.f32 %v813, 0.0
    %v970 = vmax.f32 %v884, 0.0
    %v971 = vmax.f32 %v886, 0.0
    %v972 = vmax.f32 %v379, 0.0
    %v973 = vmax.f32 %v381, 0.0
    %v974 = vmax.f32 %v452, 0.0
    %v975 = vmax.f32 %v454, 0.0
    %v976 = vmax.f32 %v525, 0.0
    %v977 = vmax.f32 %v527, 0.0
    %v978 = vmax.f32 %v598, 0.0
    %v979 = vmax.f32 %v600, 0.0
    %v980 = vmax.f32 %v671, 0.0
    %v981 = vmax.f32 %v673, 0.0
    %v982 = vmax.f32 %v744, 0.0
    %v983 = vmax.f32 %v746, 0.0
    %v984 = vmax.f32 %v817, 0.0
    %v985 = vmax.f32 %v819, 0.0
    %v986 = vmax.f32 %v890, 0.0
    %v987 = vmax.f32 %v892, 0.0
    %v988 = vmax.f32 %v383, 0.0
    %v989 = vmax.f32 %v385, 0.0
    %v990 = vmax.f32 %v456, 0.0
    %v991 = vmax.f32 %v458, 0.0
    %v992 = vmax.f32 %v529, 0.0
    %v993 = vmax.f32 %v531, 0.0
    %v994 = vmax.f32 %v602, 0.0
    %v995 = vmax.f32 %v604, 0.0
    %v996 = vmax.f32 %v675, 0.0
    %v997 = vmax.f32 %v677, 0.0
    %v998 = vmax.f32 %v748, 0.0
    %v999 = vmax.f32 %v750, 0.0
    %v1000 = vmax.f32 %v821, 0.0
    %v1001 = vmax.f32 %v823, 0.0
    %v1002 = vmax.f32 %v894, 0.0
    %v1003 = vmax.f32 %v896, 0.0
    %v1004 = vmax.f32 %v389, 0.0
    %v1005 = vmax.f32 %v391, 0.0
    %v1006 = vmax.f32 %v462, 0.0
    %v1007 = vmax.f32 %v464, 0.0
    %v1008 = vmax.f32 %v535, 0.0
    %v1009 = vmax.f32 %v537, 0.0
    %v1010 = vmax.f32 %v608, 0.0
    %v1011 = vmax.f32 %v610, 0.0
    %v1012 = vmax.f32 %v681, 0.0
    %v1013 = vmax.f32 %v683, 0.0
    %v1014 = vmax.f32 %v754, 0.0
    %v1015 = vmax.f32 %v756, 0.0
    %v1016 = vmax.f32 %v827, 0.0
    %v1017 = vmax.f32 %v829, 0.0
    %v1018 = vmax.f32 %v900, 0.0
    %v1019 = vmax.f32 %v902, 0.0
    %v1020 = vmax.f32 %v393, 0.0
    %v1021 = vmax.f32 %v395, 0.0
    %v1022 = vmax.f32 %v466, 0.0
    %v1023 = vmax.f32 %v468, 0.0
    %v1024 = vmax.f32 %v539, 0.0
    %v1025 = vmax.f32 %v541, 0.0
    %v1026 = vmax.f32 %v612, 0.0
    %v1027 = vmax.f32 %v614, 0.0
    %v1028 = vmax.f32 %v685, 0.0
    %v1029 = vmax.f32 %v687, 0.0
    %v1030 = vmax.f32 %v758, 0.0
    %v1031 = vmax.f32 %v760, 0.0
    %v1032 = vmax.f32 %v831, 0.0
    %v1033 = vmax.f32 %v833, 0.0
    %v1034 = vmax.f32 %v904, 0.0
    %v1035 = vmax.f32 %v906, 0.0
    %v1036 = vld [vmem:[%s3] sm:$0xf]
    %v1037 = vld [vmem:[%s3 + $0x4] sm:$0xf]
    %v1038 = vld [vmem:[%s3 + $0x8] sm:$0xf]
    %v1039 = vld [vmem:[%s3 + $0xc] sm:$0xf]
    %v1040 = vpack.c.bf16 %v924, %v908
    %v1041 = vpack.c.bf16 %v925, %v909
    %v1042 = vpack.c.bf16 %v926, %v910
    %v1043 = vpack.c.bf16 %v927, %v911
    %v1044 = vpack.c.bf16 %v928, %v912
    %v1045 = vpack.c.bf16 %v929, %v913
    %v1046 = vpack.c.bf16 %v930, %v914
    %v1047 = vpack.c.bf16 %v931, %v915
    %v1048 = vpack.c.bf16 %v932, %v916
    %v1049 = vpack.c.bf16 %v933, %v917
    %v1050 = vpack.c.bf16 %v934, %v918
    %v1051 = vpack.c.bf16 %v935, %v919
    %v1052 = vpack.c.bf16 %v936, %v920
    %v1053 = vpack.c.bf16 %v937, %v921
    %v1054 = vpack.c.bf16 %v938, %v922
    %v1055 = vpack.c.bf16 %v939, %v923
    %v1056 = vpack.c.bf16 %v956, %v940
    %v1057 = vpack.c.bf16 %v957, %v941
    %v1058 = vpack.c.bf16 %v958, %v942
    %v1059 = vpack.c.bf16 %v959, %v943
    %v1060 = vpack.c.bf16 %v960, %v944
    %v1061 = vpack.c.bf16 %v961, %v945
    %v1062 = vpack.c.bf16 %v962, %v946
    %v1063 = vpack.c.bf16 %v963, %v947
    %v1064 = vpack.c.bf16 %v964, %v948
    %v1065 = vpack.c.bf16 %v965, %v949
    %v1066 = vpack.c.bf16 %v966, %v950
    %v1067 = vpack.c.bf16 %v967, %v951
    %v1068 = vpack.c.bf16 %v968, %v952
    %v1069 = vpack.c.bf16 %v969, %v953
    %v1070 = vpack.c.bf16 %v970, %v954
    %v1071 = vpack.c.bf16 %v971, %v955
    %v1072 = vpack.c.bf16 %v988, %v972
    %v1073 = vpack.c.bf16 %v989, %v973
    %v1074 = vpack.c.bf16 %v990, %v974
    %v1075 = vpack.c.bf16 %v991, %v975
    %v1076 = vpack.c.bf16 %v992, %v976
    %v1077 = vpack.c.bf16 %v993, %v977
    %v1078 = vpack.c.bf16 %v994, %v978
    %v1079 = vpack.c.bf16 %v995, %v979
    %v1080 = vpack.c.bf16 %v996, %v980
    %v1081 = vpack.c.bf16 %v997, %v981
    %v1082 = vpack.c.bf16 %v998, %v982
    %v1083 = vpack.c.bf16 %v999, %v983
    %v1084 = vpack.c.bf16 %v1000, %v984
    %v1085 = vpack.c.bf16 %v1001, %v985
    %v1086 = vpack.c.bf16 %v1002, %v986
    %v1087 = vpack.c.bf16 %v1003, %v987
    %v1088 = vpack.c.bf16 %v1020, %v1004
    %v1089 = vpack.c.bf16 %v1021, %v1005
    %v1090 = vpack.c.bf16 %v1022, %v1006
    %v1091 = vpack.c.bf16 %v1023, %v1007
    %v1092 = vpack.c.bf16 %v1024, %v1008
    %v1093 = vpack.c.bf16 %v1025, %v1009
    %v1094 = vpack.c.bf16 %v1026, %v1010
    %v1095 = vpack.c.bf16 %v1027, %v1011
    %v1096 = vpack.c.bf16 %v1028, %v1012
    %v1097 = vpack.c.bf16 %v1029, %v1013
    %v1098 = vpack.c.bf16 %v1030, %v1014
    %v1099 = vpack.c.bf16 %v1031, %v1015
    %v1100 = vpack.c.bf16 %v1032, %v1016
    %v1101 = vpack.c.bf16 %v1033, %v1017
    %v1102 = vpack.c.bf16 %v1034, %v1018
    %v1103 = vpack.c.bf16 %v1035, %v1019
    %v1104 = vld [vmem:[%s4] sm:$0xff]
    %v1105 = vld [vmem:[%s4 + $0x8] sm:$0xff]
    %v1106 = vld [vmem:[%s4 + $0x10] sm:$0xff]
    %v1107 = vld [vmem:[%s4 + $0x18] sm:$0xff]
    %1109 = vset.pattern.permute.xlu0 0
    %1110 = vperm.xlu0 %1109, %v1104
    %v1111 = vpop.permute.xlu0 %1110
    %1114 = vset.pattern.permute.xlu0 0
    %1115 = vperm.xlu0 %1114, %v1105
    %v1116 = vpop.permute.xlu0 %1115
    %1119 = vset.pattern.permute.xlu0 0
    %1120 = vperm.xlu0 %1119, %v1106
    %v1121 = vpop.permute.xlu0 %1120
    %1124 = vset.pattern.permute.xlu0 0
    %1125 = vperm.xlu0 %1124, %v1107
    %v1126 = vpop.permute.xlu0 %1125
    %v1132 = vunpack.c.l.b16 %v1036
    %v1133 = vunpack.c.l.b16 %v1037
    %v1134 = vunpack.c.l.b16 %v1038
    %v1135 = vunpack.c.l.b16 %v1039
    %v1136 = vpack.c.b16 %v1133, %v1132
    %v1137 = vpack.c.b16 %v1135, %v1134
    %vm1138 = vcmask 523264
    %v1140 = vsel %vm1138, %v1136, 0
    %v1143 = vsel %vm1138, %v1137, 0
    %1145 = vmatprep.subr.bf16.mxu0 0
    %1146 = vmatpush1.bf16.msra.mxu0 0
    %1147 = vmatprep.subr.bf16.mxu0 0
    %1148 = vmatpush1.bf16.msra.mxu0 0
    %1149 = vmatprep.subr.bf16.mxu0 0
    %1150 = vmatpush1.bf16.msra.mxu0 0
    %1151 = vmatprep.subr.bf16.mxu0 0
    %1152 = vmatpush1.bf16.msra.mxu0 0
    %1153 = vmatprep.subr.bf16.mxu0 %v1089
    %1154 = vmatpush1.bf16.msra.mxu0 %v1088
    %1155 = vmatprep.subr.bf16.mxu0 %v1073
    %1156 = vmatpush1.bf16.msra.mxu0 %v1072
    %1157 = vmatprep.subr.bf16.mxu0 %v1057
    %1158 = vmatpush1.bf16.msra.mxu0 %v1056
    %1159 = vmatprep.subr.bf16.mxu0 %v1041
    %1160 = vmatpush1.bf16.msra.mxu0 %v1040
    %1161 = vmatprep.subr.bf16.mxu0 0
    %1162 = vmatpush2.bf16.msra.mxu0 0
    %1163 = vmatprep.subr.bf16.mxu0 0
    %1164 = vmatpush2.bf16.msra.mxu0 0
    %1165 = vmatprep.subr.bf16.mxu0 0
    %1166 = vmatpush2.bf16.msra.mxu0 0
    %1167 = vmatprep.subr.bf16.mxu0 0
    %1168 = vmatpush2.bf16.msra.mxu0 0
    %1169 = vmatprep.subr.bf16.mxu0 0
    %1170 = vmatpush2.bf16.msra.mxu0 0
    %1171 = vmatprep.subr.bf16.mxu0 0
    %1172 = vmatpush2.bf16.msra.mxu0 0
    %1173 = vmatprep.subr.bf16.mxu0 0
    %1174 = vmatpush2.bf16.msra.mxu0 0
    %1175 = vmatprep.subr.bf16.mxu0 0
    %1176 = vmatpush2.bf16.msra.mxu0 0
    %1177 = vmatprep.mubr.bf16.mxu0 0
    %1178 = vmatmul.mubr.bf16.gmra.mxu0 %v1140
    %v1179 = vpop.f32.mrf.mxu0
    %v1180 = vadd.f32 %v1111, %v1179
    %v1181 = vpop.f32.mrf.mxu0
    %v1182 = vadd.f32 %v1111, %v1181
    %v1183 = vpop.f32.mrf.mxu0
    %v1184 = vadd.f32 %v1116, %v1183
    %v1185 = vpop.f32.mrf.mxu0
    %v1186 = vadd.f32 %v1116, %v1185
    %1187 = vmatprep.mubr.bf16.mxu0 0
    %1188 = vmatmul.mubr.bf16.gmra.mxu0 %v1143
    %v1189 = vpop.f32.mrf.mxu0
    %v1190 = vadd.f32 %v1121, %v1189
    %v1191 = vpop.f32.mrf.mxu0
    %v1192 = vadd.f32 %v1121, %v1191
    %v1193 = vpop.f32.mrf.mxu0
    %v1194 = vadd.f32 %v1126, %v1193
    %v1195 = vpop.f32.mrf.mxu0
    %v1196 = vadd.f32 %v1126, %v1195
    %1197 = vdwg.mxu0
    %1198 = vmatprep.subr.bf16.mxu0 0
    %1199 = vmatpush1.bf16.msra.mxu0 0
    %1200 = vmatprep.subr.bf16.mxu0 0
    %1201 = vmatpush1.bf16.msra.mxu0 0
    %1202 = vmatprep.subr.bf16.mxu0 0
    %1203 = vmatpush1.bf16.msra.mxu0 0
    %1204 = vmatprep.subr.bf16.mxu0 0
    %1205 = vmatpush1.bf16.msra.mxu0 0
    %1206 = vmatprep.subr.bf16.mxu0 %v1091
    %1207 = vmatpush1.bf16.msra.mxu0 %v1090
    %1208 = vmatprep.subr.bf16.mxu0 %v1075
    %1209 = vmatpush1.bf16.msra.mxu0 %v1074
    %1210 = vmatprep.subr.bf16.mxu0 %v1059
    %1211 = vmatpush1.bf16.msra.mxu0 %v1058
    %1212 = vmatprep.subr.bf16.mxu0 %v1043
    %1213 = vmatpush1.bf16.msra.mxu0 %v1042
    %1214 = vmatprep.subr.bf16.mxu0 0
    %1215 = vmatpush2.bf16.msra.mxu0 0
    %1216 = vmatprep.subr.bf16.mxu0 0
    %1217 = vmatpush2.bf16.msra.mxu0 0
    %1218 = vmatprep.subr.bf16.mxu0 0
    %1219 = vmatpush2.bf16.msra.mxu0 0
    %1220 = vmatprep.subr.bf16.mxu0 0
    %1221 = vmatpush2.bf16.msra.mxu0 0
    %1222 = vmatprep.subr.bf16.mxu0 0
    %1223 = vmatpush2.bf16.msra.mxu0 0
    %1224 = vmatprep.subr.bf16.mxu0 0
    %1225 = vmatpush2.bf16.msra.mxu0 0
    %1226 = vmatprep.subr.bf16.mxu0 0
    %1227 = vmatpush2.bf16.msra.mxu0 0
    %1228 = vmatprep.subr.bf16.mxu0 0
    %1229 = vmatpush2.bf16.msra.mxu0 0
    %1230 = vmatprep.mubr.bf16.mxu0 0
    %1231 = vmatmul.mubr.bf16.gmra.mxu0 %v1140
    %v1232 = vpop.f32.mrf.mxu0
    %v1233 = vadd.f32 %v1111, %v1232
    %v1234 = vpop.f32.mrf.mxu0
    %v1235 = vadd.f32 %v1111, %v1234
    %v1236 = vpop.f32.mrf.mxu0
    %v1237 = vadd.f32 %v1116, %v1236
    %v1238 = vpop.f32.mrf.mxu0
    %v1239 = vadd.f32 %v1116, %v1238
    %1240 = vmatprep.mubr.bf16.mxu0 0
    %1241 = vmatmul.mubr.bf16.gmra.mxu0 %v1143
    %v1242 = vpop.f32.mrf.mxu0
    %v1243 = vadd.f32 %v1121, %v1242
    %v1244 = vpop.f32.mrf.mxu0
    %v1245 = vadd.f32 %v1121, %v1244
    %v1246 = vpop.f32.mrf.mxu0
    %v1247 = vadd.f32 %v1126, %v1246
    %v1248 = vpop.f32.mrf.mxu0
    %v1249 = vadd.f32 %v1126, %v1248
    %1250 = vdwg.mxu0
    %1251 = vmatprep.subr.bf16.mxu0 0
    %1252 = vmatpush1.bf16.msra.mxu0 0
    %1253 = vmatprep.subr.bf16.mxu0 0
    %1254 = vmatpush1.bf16.msra.mxu0 0
    %1255 = vmatprep.subr.bf16.mxu0 0
    %1256 = vmatpush1.bf16.msra.mxu0 0
    %1257 = vmatprep.subr.bf16.mxu0 0
    %1258 = vmatpush1.bf16.msra.mxu0 0
    %1259 = vmatprep.subr.bf16.mxu0 %v1093
    %1260 = vmatpush1.bf16.msra.mxu0 %v1092
    %1261 = vmatprep.subr.bf16.mxu0 %v1077
    %1262 = vmatpush1.bf16.msra.mxu0 %v1076
    %1263 = vmatprep.subr.bf16.mxu0 %v1061
    %1264 = vmatpush1.bf16.msra.mxu0 %v1060
    %1265 = vmatprep.subr.bf16.mxu0 %v1045
    %1266 = vmatpush1.bf16.msra.mxu0 %v1044
    %1267 = vmatprep.subr.bf16.mxu0 0
    %1268 = vmatpush2.bf16.msra.mxu0 0
    %1269 = vmatprep.subr.bf16.mxu0 0
    %1270 = vmatpush2.bf16.msra.mxu0 0
    %1271 = vmatprep.subr.bf16.mxu0 0
    %1272 = vmatpush2.bf16.msra.mxu0 0
    %1273 = vmatprep.subr.bf16.mxu0 0
    %1274 = vmatpush2.bf16.msra.mxu0 0
    %1275 = vmatprep.subr.bf16.mxu0 0
    %1276 = vmatpush2.bf16.msra.mxu0 0
    %1277 = vmatprep.subr.bf16.mxu0 0
    %1278 = vmatpush2.bf16.msra.mxu0 0
    %1279 = vmatprep.subr.bf16.mxu0 0
    %1280 = vmatpush2.bf16.msra.mxu0 0
    %1281 = vmatprep.subr.bf16.mxu0 0
    %1282 = vmatpush2.bf16.msra.mxu0 0
    %1283 = vmatprep.mubr.bf16.mxu0 0
    %1284 = vmatmul.mubr.bf16.gmra.mxu0 %v1140
    %v1285 = vpop.f32.mrf.mxu0
    %v1286 = vadd.f32 %v1111, %v1285
    %v1287 = vpop.f32.mrf.mxu0
    %v1288 = vadd.f32 %v1111, %v1287
    %v1289 = vpop.f32.mrf.mxu0
    %v1290 = vadd.f32 %v1116, %v1289
    %v1291 = vpop.f32.mrf.mxu0
    %v1292 = vadd.f32 %v1116, %v1291
    %1293 = vmatprep.mubr.bf16.mxu0 0
    %1294 = vmatmul.mubr.bf16.gmra.mxu0 %v1143
    %v1295 = vpop.f32.mrf.mxu0
    %v1296 = vadd.f32 %v1121, %v1295
    %v1297 = vpop.f32.mrf.mxu0
    %v1298 = vadd.f32 %v1121, %v1297
    %v1299 = vpop.f32.mrf.mxu0
    %v1300 = vadd.f32 %v1126, %v1299
    %v1301 = vpop.f32.mrf.mxu0
    %v1302 = vadd.f32 %v1126, %v1301
    %1303 = vdwg.mxu0
    %1304 = vmatprep.subr.bf16.mxu0 0
    %1305 = vmatpush1.bf16.msra.mxu0 0
    %1306 = vmatprep.subr.bf16.mxu0 0
    %1307 = vmatpush1.bf16.msra.mxu0 0
    %1308 = vmatprep.subr.bf16.mxu0 0
    %1309 = vmatpush1.bf16.msra.mxu0 0
    %1310 = vmatprep.subr.bf16.mxu0 0
    %1311 = vmatpush1.bf16.msra.mxu0 0
    %1312 = vmatprep.subr.bf16.mxu0 %v1095
    %1313 = vmatpush1.bf16.msra.mxu0 %v1094
    %1314 = vmatprep.subr.bf16.mxu0 %v1079
    %1315 = vmatpush1.bf16.msra.mxu0 %v1078
    %1316 = vmatprep.subr.bf16.mxu0 %v1063
    %1317 = vmatpush1.bf16.msra.mxu0 %v1062
    %1318 = vmatprep.subr.bf16.mxu0 %v1047
    %1319 = vmatpush1.bf16.msra.mxu0 %v1046
    %1320 = vmatprep.subr.bf16.mxu0 0
    %1321 = vmatpush2.bf16.msra.mxu0 0
    %1322 = vmatprep.subr.bf16.mxu0 0
    %1323 = vmatpush2.bf16.msra.mxu0 0
    %1324 = vmatprep.subr.bf16.mxu0 0
    %1325 = vmatpush2.bf16.msra.mxu0 0
    %1326 = vmatprep.subr.bf16.mxu0 0
    %1327 = vmatpush2.bf16.msra.mxu0 0
    %1328 = vmatprep.subr.bf16.mxu0 0
    %1329 = vmatpush2.bf16.msra.mxu0 0
    %1330 = vmatprep.subr.bf16.mxu0 0
    %1331 = vmatpush2.bf16.msra.mxu0 0
    %1332 = vmatprep.subr.bf16.mxu0 0
    %1333 = vmatpush2.bf16.msra.mxu0 0
    %1334 = vmatprep.subr.bf16.mxu0 0
    %1335 = vmatpush2.bf16.msra.mxu0 0
    %1336 = vmatprep.mubr.bf16.mxu0 0
    %1337 = vmatmul.mubr.bf16.gmra.mxu0 %v1140
    %v1338 = vpop.f32.mrf.mxu0
    %v1339 = vadd.f32 %v1111, %v1338
    %v1340 = vpop.f32.mrf.mxu0
    %v1341 = vadd.f32 %v1111, %v1340
    %v1342 = vpop.f32.mrf.mxu0
    %v1343 = vadd.f32 %v1116, %v1342
    %v1344 = vpop.f32.mrf.mxu0
    %v1345 = vadd.f32 %v1116, %v1344
    %1346 = vmatprep.mubr.bf16.mxu0 0
    %1347 = vmatmul.mubr.bf16.gmra.mxu0 %v1143
    %v1348 = vpop.f32.mrf.mxu0
    %v1349 = vadd.f32 %v1121, %v1348
    %v1350 = vpop.f32.mrf.mxu0
    %v1351 = vadd.f32 %v1121, %v1350
    %v1352 = vpop.f32.mrf.mxu0
    %v1353 = vadd.f32 %v1126, %v1352
    %v1354 = vpop.f32.mrf.mxu0
    %v1355 = vadd.f32 %v1126, %v1354
    %1356 = vdwg.mxu0
    %1357 = vmatprep.subr.bf16.mxu0 0
    %1358 = vmatpush1.bf16.msra.mxu0 0
    %1359 = vmatprep.subr.bf16.mxu0 0
    %1360 = vmatpush1.bf16.msra.mxu0 0
    %1361 = vmatprep.subr.bf16.mxu0 0
    %1362 = vmatpush1.bf16.msra.mxu0 0
    %1363 = vmatprep.subr.bf16.mxu0 0
    %1364 = vmatpush1.bf16.msra.mxu0 0
    %1365 = vmatprep.subr.bf16.mxu0 %v1097
    %1366 = vmatpush1.bf16.msra.mxu0 %v1096
    %1367 = vmatprep.subr.bf16.mxu0 %v1081
    %1368 = vmatpush1.bf16.msra.mxu0 %v1080
    %1369 = vmatprep.subr.bf16.mxu0 %v1065
    %1370 = vmatpush1.bf16.msra.mxu0 %v1064
    %1371 = vmatprep.subr.bf16.mxu0 %v1049
    %1372 = vmatpush1.bf16.msra.mxu0 %v1048
    %1373 = vmatprep.subr.bf16.mxu0 0
    %1374 = vmatpush2.bf16.msra.mxu0 0
    %1375 = vmatprep.subr.bf16.mxu0 0
    %1376 = vmatpush2.bf16.msra.mxu0 0
    %1377 = vmatprep.subr.bf16.mxu0 0
    %1378 = vmatpush2.bf16.msra.mxu0 0
    %1379 = vmatprep.subr.bf16.mxu0 0
    %1380 = vmatpush2.bf16.msra.mxu0 0
    %1381 = vmatprep.subr.bf16.mxu0 0
    %1382 = vmatpush2.bf16.msra.mxu0 0
    %1383 = vmatprep.subr.bf16.mxu0 0
    %1384 = vmatpush2.bf16.msra.mxu0 0
    %1385 = vmatprep.subr.bf16.mxu0 0
    %1386 = vmatpush2.bf16.msra.mxu0 0
    %1387 = vmatprep.subr.bf16.mxu0 0
    %1388 = vmatpush2.bf16.msra.mxu0 0
    %1389 = vmatprep.mubr.bf16.mxu0 0
    %1390 = vmatmul.mubr.bf16.gmra.mxu0 %v1140
    %v1391 = vpop.f32.mrf.mxu0
    %v1392 = vadd.f32 %v1111, %v1391
    %v1393 = vpop.f32.mrf.mxu0
    %v1394 = vadd.f32 %v1111, %v1393
    %v1395 = vpop.f32.mrf.mxu0
    %v1396 = vadd.f32 %v1116, %v1395
    %v1397 = vpop.f32.mrf.mxu0
    %v1398 = vadd.f32 %v1116, %v1397
    %1399 = vmatprep.mubr.bf16.mxu0 0
    %1400 = vmatmul.mubr.bf16.gmra.mxu0 %v1143
    %v1401 = vpop.f32.mrf.mxu0
    %v1402 = vadd.f32 %v1121, %v1401
    %v1403 = vpop.f32.mrf.mxu0
    %v1404 = vadd.f32 %v1121, %v1403
    %v1405 = vpop.f32.mrf.mxu0
    %v1406 = vadd.f32 %v1126, %v1405
    %v1407 = vpop.f32.mrf.mxu0
    %v1408 = vadd.f32 %v1126, %v1407
    %1409 = vdwg.mxu0
    %1410 = vmatprep.subr.bf16.mxu0 0
    %1411 = vmatpush1.bf16.msra.mxu0 0
    %1412 = vmatprep.subr.bf16.mxu0 0
    %1413 = vmatpush1.bf16.msra.mxu0 0
    %1414 = vmatprep.subr.bf16.mxu0 0
    %1415 = vmatpush1.bf16.msra.mxu0 0
    %1416 = vmatprep.subr.bf16.mxu0 0
    %1417 = vmatpush1.bf16.msra.mxu0 0
    %1418 = vmatprep.subr.bf16.mxu0 %v1099
    %1419 = vmatpush1.bf16.msra.mxu0 %v1098
    %1420 = vmatprep.subr.bf16.mxu0 %v1083
    %1421 = vmatpush1.bf16.msra.mxu0 %v1082
    %1422 = vmatprep.subr.bf16.mxu0 %v1067
    %1423 = vmatpush1.bf16.msra.mxu0 %v1066
    %1424 = vmatprep.subr.bf16.mxu0 %v1051
    %1425 = vmatpush1.bf16.msra.mxu0 %v1050
    %1426 = vmatprep.subr.bf16.mxu0 0
    %1427 = vmatpush2.bf16.msra.mxu0 0
    %1428 = vmatprep.subr.bf16.mxu0 0
    %1429 = vmatpush2.bf16.msra.mxu0 0
    %1430 = vmatprep.subr.bf16.mxu0 0
    %1431 = vmatpush2.bf16.msra.mxu0 0
    %1432 = vmatprep.subr.bf16.mxu0 0
    %1433 = vmatpush2.bf16.msra.mxu0 0
    %1434 = vmatprep.subr.bf16.mxu0 0
    %1435 = vmatpush2.bf16.msra.mxu0 0
    %1436 = vmatprep.subr.bf16.mxu0 0
    %1437 = vmatpush2.bf16.msra.mxu0 0
    %1438 = vmatprep.subr.bf16.mxu0 0
    %1439 = vmatpush2.bf16.msra.mxu0 0
    %1440 = vmatprep.subr.bf16.mxu0 0
    %1441 = vmatpush2.bf16.msra.mxu0 0
    %1442 = vmatprep.mubr.bf16.mxu0 0
    %1443 = vmatmul.mubr.bf16.gmra.mxu0 %v1140
    %v1444 = vpop.f32.mrf.mxu0
    %v1445 = vadd.f32 %v1111, %v1444
    %v1446 = vpop.f32.mrf.mxu0
    %v1447 = vadd.f32 %v1111, %v1446
    %v1448 = vpop.f32.mrf.mxu0
    %v1449 = vadd.f32 %v1116, %v1448
    %v1450 = vpop.f32.mrf.mxu0
    %v1451 = vadd.f32 %v1116, %v1450
    %1452 = vmatprep.mubr.bf16.mxu0 0
    %1453 = vmatmul.mubr.bf16.gmra.mxu0 %v1143
    %v1454 = vpop.f32.mrf.mxu0
    %v1455 = vadd.f32 %v1121, %v1454
    %v1456 = vpop.f32.mrf.mxu0
    %v1457 = vadd.f32 %v1121, %v1456
    %v1458 = vpop.f32.mrf.mxu0
    %v1459 = vadd.f32 %v1126, %v1458
    %v1460 = vpop.f32.mrf.mxu0
    %v1461 = vadd.f32 %v1126, %v1460
    %1462 = vdwg.mxu0
    %1463 = vmatprep.subr.bf16.mxu0 0
    %1464 = vmatpush1.bf16.msra.mxu0 0
    %1465 = vmatprep.subr.bf16.mxu0 0
    %1466 = vmatpush1.bf16.msra.mxu0 0
    %1467 = vmatprep.subr.bf16.mxu0 0
    %1468 = vmatpush1.bf16.msra.mxu0 0
    %1469 = vmatprep.subr.bf16.mxu0 0
    %1470 = vmatpush1.bf16.msra.mxu0 0
    %1471 = vmatprep.subr.bf16.mxu0 %v1101
    %1472 = vmatpush1.bf16.msra.mxu0 %v1100
    %1473 = vmatprep.subr.bf16.mxu0 %v1085
    %1474 = vmatpush1.bf16.msra.mxu0 %v1084
    %1475 = vmatprep.subr.bf16.mxu0 %v1069
    %1476 = vmatpush1.bf16.msra.mxu0 %v1068
    %1477 = vmatprep.subr.bf16.mxu0 %v1053
    %1478 = vmatpush1.bf16.msra.mxu0 %v1052
    %1479 = vmatprep.subr.bf16.mxu0 0
    %1480 = vmatpush2.bf16.msra.mxu0 0
    %1481 = vmatprep.subr.bf16.mxu0 0
    %1482 = vmatpush2.bf16.msra.mxu0 0
    %1483 = vmatprep.subr.bf16.mxu0 0
    %1484 = vmatpush2.bf16.msra.mxu0 0
    %1485 = vmatprep.subr.bf16.mxu0 0
    %1486 = vmatpush2.bf16.msra.mxu0 0
    %1487 = vmatprep.subr.bf16.mxu0 0
    %1488 = vmatpush2.bf16.msra.mxu0 0
    %1489 = vmatprep.subr.bf16.mxu0 0
    %1490 = vmatpush2.bf16.msra.mxu0 0
    %1491 = vmatprep.subr.bf16.mxu0 0
    %1492 = vmatpush2.bf16.msra.mxu0 0
    %1493 = vmatprep.subr.bf16.mxu0 0
    %1494 = vmatpush2.bf16.msra.mxu0 0
    %1495 = vmatprep.mubr.bf16.mxu0 0
    %1496 = vmatmul.mubr.bf16.gmra.mxu0 %v1140
    %v1497 = vpop.f32.mrf.mxu0
    %v1498 = vadd.f32 %v1111, %v1497
    %v1499 = vpop.f32.mrf.mxu0
    %v1500 = vadd.f32 %v1111, %v1499
    %v1501 = vpop.f32.mrf.mxu0
    %v1502 = vadd.f32 %v1116, %v1501
    %v1503 = vpop.f32.mrf.mxu0
    %v1504 = vadd.f32 %v1116, %v1503
    %1505 = vmatprep.mubr.bf16.mxu0 0
    %1506 = vmatmul.mubr.bf16.gmra.mxu0 %v1143
    %v1507 = vpop.f32.mrf.mxu0
    %v1508 = vadd.f32 %v1121, %v1507
    %v1509 = vpop.f32.mrf.mxu0
    %v1510 = vadd.f32 %v1121, %v1509
    %v1511 = vpop.f32.mrf.mxu0
    %v1512 = vadd.f32 %v1126, %v1511
    %v1513 = vpop.f32.mrf.mxu0
    %v1514 = vadd.f32 %v1126, %v1513
    %1515 = vdwg.mxu0
    %1516 = vmatprep.subr.bf16.mxu0 0
    %1517 = vmatpush1.bf16.msra.mxu0 0
    %1518 = vmatprep.subr.bf16.mxu0 0
    %1519 = vmatpush1.bf16.msra.mxu0 0
    %1520 = vmatprep.subr.bf16.mxu0 0
    %1521 = vmatpush1.bf16.msra.mxu0 0
    %1522 = vmatprep.subr.bf16.mxu0 0
    %1523 = vmatpush1.bf16.msra.mxu0 0
    %1524 = vmatprep.subr.bf16.mxu0 %v1103
    %1525 = vmatpush1.bf16.msra.mxu0 %v1102
    %1526 = vmatprep.subr.bf16.mxu0 %v1087
    %1527 = vmatpush1.bf16.msra.mxu0 %v1086
    %1528 = vmatprep.subr.bf16.mxu0 %v1071
    %1529 = vmatpush1.bf16.msra.mxu0 %v1070
    %1530 = vmatprep.subr.bf16.mxu0 %v1055
    %1531 = vmatpush1.bf16.msra.mxu0 %v1054
    %1532 = vmatprep.subr.bf16.mxu0 0
    %1533 = vmatpush2.bf16.msra.mxu0 0
    %1534 = vmatprep.subr.bf16.mxu0 0
    %1535 = vmatpush2.bf16.msra.mxu0 0
    %1536 = vmatprep.subr.bf16.mxu0 0
    %1537 = vmatpush2.bf16.msra.mxu0 0
    %1538 = vmatprep.subr.bf16.mxu0 0
    %1539 = vmatpush2.bf16.msra.mxu0 0
    %1540 = vmatprep.subr.bf16.mxu0 0
    %1541 = vmatpush2.bf16.msra.mxu0 0
    %1542 = vmatprep.subr.bf16.mxu0 0
    %1543 = vmatpush2.bf16.msra.mxu0 0
    %1544 = vmatprep.subr.bf16.mxu0 0
    %1545 = vmatpush2.bf16.msra.mxu0 0
    %1546 = vmatprep.subr.bf16.mxu0 0
    %1547 = vmatpush2.bf16.msra.mxu0 0
    %1548 = vmatprep.mubr.bf16.mxu0 0
    %1549 = vmatmul.mubr.bf16.gmra.mxu0 %v1140
    %v1550 = vpop.f32.mrf.mxu0
    %v1551 = vadd.f32 %v1111, %v1550
    %v1552 = vpop.f32.mrf.mxu0
    %v1553 = vadd.f32 %v1111, %v1552
    %v1554 = vpop.f32.mrf.mxu0
    %v1555 = vadd.f32 %v1116, %v1554
    %v1556 = vpop.f32.mrf.mxu0
    %v1557 = vadd.f32 %v1116, %v1556
    %1558 = vmatprep.mubr.bf16.mxu0 0
    %1559 = vmatmul.mubr.bf16.gmra.mxu0 %v1143
    %v1560 = vpop.f32.mrf.mxu0
    %v1561 = vadd.f32 %v1121, %v1560
    %v1562 = vpop.f32.mrf.mxu0
    %v1563 = vadd.f32 %v1121, %v1562
    %v1564 = vpop.f32.mrf.mxu0
    %v1565 = vadd.f32 %v1126, %v1564
    %v1566 = vpop.f32.mrf.mxu0
    %v1567 = vadd.f32 %v1126, %v1566
    %1568 = vdwg.mxu0
    %v1569 = vtanh.pop %v1180
    %v1570 = vtanh.pop %v1182
    %v1571 = vtanh.pop %v1233
    %v1572 = vtanh.pop %v1235
    %v1573 = vtanh.pop %v1286
    %v1574 = vtanh.pop %v1288
    %v1575 = vtanh.pop %v1339
    %v1576 = vtanh.pop %v1341
    %v1577 = vtanh.pop %v1392
    %v1578 = vtanh.pop %v1394
    %v1579 = vtanh.pop %v1445
    %v1580 = vtanh.pop %v1447
    %v1581 = vtanh.pop %v1498
    %v1582 = vtanh.pop %v1500
    %v1583 = vtanh.pop %v1551
    %v1584 = vtanh.pop %v1553
    %v1585 = vtanh.pop %v1184
    %v1586 = vtanh.pop %v1186
    %v1587 = vtanh.pop %v1237
    %v1588 = vtanh.pop %v1239
    %v1589 = vtanh.pop %v1290
    %v1590 = vtanh.pop %v1292
    %v1591 = vtanh.pop %v1343
    %v1592 = vtanh.pop %v1345
    %v1593 = vtanh.pop %v1396
    %v1594 = vtanh.pop %v1398
    %v1595 = vtanh.pop %v1449
    %v1596 = vtanh.pop %v1451
    %v1597 = vtanh.pop %v1502
    %v1598 = vtanh.pop %v1504
    %v1599 = vtanh.pop %v1555
    %v1600 = vtanh.pop %v1557
    %v1601 = vtanh.pop %v1190
    %v1602 = vtanh.pop %v1192
    %v1603 = vtanh.pop %v1243
    %v1604 = vtanh.pop %v1245
    %v1605 = vtanh.pop %v1296
    %v1606 = vtanh.pop %v1298
    %v1607 = vtanh.pop %v1349
    %v1608 = vtanh.pop %v1351
    %v1609 = vtanh.pop %v1402
    %v1610 = vtanh.pop %v1404
    %v1611 = vtanh.pop %v1455
    %v1612 = vtanh.pop %v1457
    %v1613 = vtanh.pop %v1508
    %v1614 = vtanh.pop %v1510
    %v1615 = vtanh.pop %v1561
    %v1616 = vtanh.pop %v1563
    %v1617 = vtanh.pop %v1194
    %v1618 = vtanh.pop %v1196
    %v1619 = vtanh.pop %v1247
    %v1620 = vtanh.pop %v1249
    %v1621 = vtanh.pop %v1300
    %v1622 = vtanh.pop %v1302
    %v1623 = vtanh.pop %v1353
    %v1624 = vtanh.pop %v1355
    %v1625 = vtanh.pop %v1406
    %v1626 = vtanh.pop %v1408
    %v1627 = vtanh.pop %v1459
    %v1628 = vtanh.pop %v1461
    %v1629 = vtanh.pop %v1512
    %v1630 = vtanh.pop %v1514
    %v1631 = vtanh.pop %v1565
    %v1632 = vtanh.pop %v1567
    %v1633 = vld [vmem:[%s5] sm:$0xff]
    %v1634 = vld [vmem:[%s5 + $0x8] sm:$0xff]
    %v1635 = vld [vmem:[%s5 + $0x10] sm:$0xff]
    %v1636 = vld [vmem:[%s5 + $0x18] sm:$0xff]
    %1638 = vset.pattern.permute.xlu0 0
    %1639 = vperm.xlu0 %1638, %v1633
    %v1640 = vpop.permute.xlu0 %1639
    %1643 = vset.pattern.permute.xlu0 0
    %1644 = vperm.xlu0 %1643, %v1634
    %v1645 = vpop.permute.xlu0 %1644
    %1648 = vset.pattern.permute.xlu0 0
    %1649 = vperm.xlu0 %1648, %v1635
    %v1650 = vpop.permute.xlu0 %1649
    %1653 = vset.pattern.permute.xlu0 0
    %1654 = vperm.xlu0 %1653, %v1636
    %v1655 = vpop.permute.xlu0 %1654
    %v1657 = vmul.f32 %v1569, %v1640
    %v1658 = vmul.f32 %v1570, %v1640
    %v1659 = vmul.f32 %v1571, %v1640
    %v1660 = vmul.f32 %v1572, %v1640
    %v1661 = vmul.f32 %v1573, %v1640
    %v1662 = vmul.f32 %v1574, %v1640
    %v1663 = vmul.f32 %v1575, %v1640
    %v1664 = vmul.f32 %v1576, %v1640
    %v1665 = vmul.f32 %v1577, %v1640
    %v1666 = vmul.f32 %v1578, %v1640
    %v1667 = vmul.f32 %v1579, %v1640
    %v1668 = vmul.f32 %v1580, %v1640
    %v1669 = vmul.f32 %v1581, %v1640
    %v1670 = vmul.f32 %v1582, %v1640
    %v1671 = vmul.f32 %v1583, %v1640
    %v1672 = vmul.f32 %v1584, %v1640
    %v1673 = vmul.f32 %v1585, %v1645
    %v1674 = vmul.f32 %v1586, %v1645
    %v1675 = vmul.f32 %v1587, %v1645
    %v1676 = vmul.f32 %v1588, %v1645
    %v1677 = vmul.f32 %v1589, %v1645
    %v1678 = vmul.f32 %v1590, %v1645
    %v1679 = vmul.f32 %v1591, %v1645
    %v1680 = vmul.f32 %v1592, %v1645
    %v1681 = vmul.f32 %v1593, %v1645
    %v1682 = vmul.f32 %v1594, %v1645
    %v1683 = vmul.f32 %v1595, %v1645
    %v1684 = vmul.f32 %v1596, %v1645
    %v1685 = vmul.f32 %v1597, %v1645
    %v1686 = vmul.f32 %v1598, %v1645
    %v1687 = vmul.f32 %v1599, %v1645
    %v1688 = vmul.f32 %v1600, %v1645
    %v1689 = vmul.f32 %v1601, %v1650
    %v1690 = vmul.f32 %v1602, %v1650
    %v1691 = vmul.f32 %v1603, %v1650
    %v1692 = vmul.f32 %v1604, %v1650
    %v1693 = vmul.f32 %v1605, %v1650
    %v1694 = vmul.f32 %v1606, %v1650
    %v1695 = vmul.f32 %v1607, %v1650
    %v1696 = vmul.f32 %v1608, %v1650
    %v1697 = vmul.f32 %v1609, %v1650
    %v1698 = vmul.f32 %v1610, %v1650
    %v1699 = vmul.f32 %v1611, %v1650
    %v1700 = vmul.f32 %v1612, %v1650
    %v1701 = vmul.f32 %v1613, %v1650
    %v1702 = vmul.f32 %v1614, %v1650
    %v1703 = vmul.f32 %v1615, %v1650
    %v1704 = vmul.f32 %v1616, %v1650
    %v1705 = vmul.f32 %v1617, %v1655
    %v1706 = vmul.f32 %v1618, %v1655
    %v1707 = vmul.f32 %v1619, %v1655
    %v1708 = vmul.f32 %v1620, %v1655
    %v1709 = vmul.f32 %v1621, %v1655
    %v1710 = vmul.f32 %v1622, %v1655
    %v1711 = vmul.f32 %v1623, %v1655
    %v1712 = vmul.f32 %v1624, %v1655
    %v1713 = vmul.f32 %v1625, %v1655
    %v1714 = vmul.f32 %v1626, %v1655
    %v1715 = vmul.f32 %v1627, %v1655
    %v1716 = vmul.f32 %v1628, %v1655
    %v1717 = vmul.f32 %v1629, %v1655
    %v1718 = vmul.f32 %v1630, %v1655
    %v1719 = vmul.f32 %v1631, %v1655
    %v1720 = vmul.f32 %v1632, %v1655
    %v1721 = vadd.f32 %v1657, %v1673
    %v1722 = vadd.f32 %v1721, %v1689
    %v1723 = vadd.f32 %v1722, %v1705
    %v1724 = vrot.slane %v1723, 4
    %v1725 = vadd.f32 %v1723, %v1724
    %v1726 = vrot.slane %v1725, 2
    %v1727 = vadd.f32 %v1725, %v1726
    %v1728 = vrot.slane %v1727, 1
    %v1729 = vadd.f32 %v1727, %v1728
    %v1730 = vadd.f32 %v1658, %v1674
    %v1731 = vadd.f32 %v1730, %v1690
    %v1732 = vadd.f32 %v1731, %v1706
    %v1733 = vrot.slane %v1732, 4
    %v1734 = vadd.f32 %v1732, %v1733
    %v1735 = vrot.slane %v1734, 2
    %v1736 = vadd.f32 %v1734, %v1735
    %v1737 = vrot.slane %v1736, 1
    %v1738 = vadd.f32 %v1736, %v1737
    %v1739 = vadd.f32 %v1659, %v1675
    %v1740 = vadd.f32 %v1739, %v1691
    %v1741 = vadd.f32 %v1740, %v1707
    %v1742 = vrot.slane %v1741, 4
    %v1743 = vadd.f32 %v1741, %v1742
    %v1744 = vrot.slane %v1743, 2
    %v1745 = vadd.f32 %v1743, %v1744
    %v1746 = vrot.slane %v1745, 1
    %v1747 = vadd.f32 %v1745, %v1746
    %v1748 = vadd.f32 %v1660, %v1676
    %v1749 = vadd.f32 %v1748, %v1692
    %v1750 = vadd.f32 %v1749, %v1708
    %v1751 = vrot.slane %v1750, 4
    %v1752 = vadd.f32 %v1750, %v1751
    %v1753 = vrot.slane %v1752, 2
    %v1754 = vadd.f32 %v1752, %v1753
    %v1755 = vrot.slane %v1754, 1
    %v1756 = vadd.f32 %v1754, %v1755
    %v1757 = vadd.f32 %v1661, %v1677
    %v1758 = vadd.f32 %v1757, %v1693
    %v1759 = vadd.f32 %v1758, %v1709
    %v1760 = vrot.slane %v1759, 4
    %v1761 = vadd.f32 %v1759, %v1760
    %v1762 = vrot.slane %v1761, 2
    %v1763 = vadd.f32 %v1761, %v1762
    %v1764 = vrot.slane %v1763, 1
    %v1765 = vadd.f32 %v1763, %v1764
    %v1766 = vadd.f32 %v1662, %v1678
    %v1767 = vadd.f32 %v1766, %v1694
    %v1768 = vadd.f32 %v1767, %v1710
    %v1769 = vrot.slane %v1768, 4
    %v1770 = vadd.f32 %v1768, %v1769
    %v1771 = vrot.slane %v1770, 2
    %v1772 = vadd.f32 %v1770, %v1771
    %v1773 = vrot.slane %v1772, 1
    %v1774 = vadd.f32 %v1772, %v1773
    %v1775 = vadd.f32 %v1663, %v1679
    %v1776 = vadd.f32 %v1775, %v1695
    %v1777 = vadd.f32 %v1776, %v1711
    %v1778 = vrot.slane %v1777, 4
    %v1779 = vadd.f32 %v1777, %v1778
    %v1780 = vrot.slane %v1779, 2
    %v1781 = vadd.f32 %v1779, %v1780
    %v1782 = vrot.slane %v1781, 1
    %v1783 = vadd.f32 %v1781, %v1782
    %v1784 = vadd.f32 %v1664, %v1680
    %v1785 = vadd.f32 %v1784, %v1696
    %v1786 = vadd.f32 %v1785, %v1712
    %v1787 = vrot.slane %v1786, 4
    %v1788 = vadd.f32 %v1786, %v1787
    %v1789 = vrot.slane %v1788, 2
    %v1790 = vadd.f32 %v1788, %v1789
    %v1791 = vrot.slane %v1790, 1
    %v1792 = vadd.f32 %v1790, %v1791
    %v1793 = vadd.f32 %v1665, %v1681
    %v1794 = vadd.f32 %v1793, %v1697
    %v1795 = vadd.f32 %v1794, %v1713
    %v1796 = vrot.slane %v1795, 4
    %v1797 = vadd.f32 %v1795, %v1796
    %v1798 = vrot.slane %v1797, 2
    %v1799 = vadd.f32 %v1797, %v1798
    %v1800 = vrot.slane %v1799, 1
    %v1801 = vadd.f32 %v1799, %v1800
    %v1802 = vadd.f32 %v1666, %v1682
    %v1803 = vadd.f32 %v1802, %v1698
    %v1804 = vadd.f32 %v1803, %v1714
    %v1805 = vrot.slane %v1804, 4
    %v1806 = vadd.f32 %v1804, %v1805
    %v1807 = vrot.slane %v1806, 2
    %v1808 = vadd.f32 %v1806, %v1807
    %v1809 = vrot.slane %v1808, 1
    %v1810 = vadd.f32 %v1808, %v1809
    %v1811 = vadd.f32 %v1667, %v1683
    %v1812 = vadd.f32 %v1811, %v1699
    %v1813 = vadd.f32 %v1812, %v1715
    %v1814 = vrot.slane %v1813, 4
    %v1815 = vadd.f32 %v1813, %v1814
    %v1816 = vrot.slane %v1815, 2
    %v1817 = vadd.f32 %v1815, %v1816
    %v1818 = vrot.slane %v1817, 1
    %v1819 = vadd.f32 %v1817, %v1818
    %v1820 = vadd.f32 %v1668, %v1684
    %v1821 = vadd.f32 %v1820, %v1700
    %v1822 = vadd.f32 %v1821, %v1716
    %v1823 = vrot.slane %v1822, 4
    %v1824 = vadd.f32 %v1822, %v1823
    %v1825 = vrot.slane %v1824, 2
    %v1826 = vadd.f32 %v1824, %v1825
    %v1827 = vrot.slane %v1826, 1
    %v1828 = vadd.f32 %v1826, %v1827
    %v1829 = vadd.f32 %v1669, %v1685
    %v1830 = vadd.f32 %v1829, %v1701
    %v1831 = vadd.f32 %v1830, %v1717
    %v1832 = vrot.slane %v1831, 4
    %v1833 = vadd.f32 %v1831, %v1832
    %v1834 = vrot.slane %v1833, 2
    %v1835 = vadd.f32 %v1833, %v1834
    %v1836 = vrot.slane %v1835, 1
    %v1837 = vadd.f32 %v1835, %v1836
    %v1838 = vadd.f32 %v1670, %v1686
    %v1839 = vadd.f32 %v1838, %v1702
    %v1840 = vadd.f32 %v1839, %v1718
    %v1841 = vrot.slane %v1840, 4
    %v1842 = vadd.f32 %v1840, %v1841
    %v1843 = vrot.slane %v1842, 2
    %v1844 = vadd.f32 %v1842, %v1843
    %v1845 = vrot.slane %v1844, 1
    %v1846 = vadd.f32 %v1844, %v1845
    %v1847 = vadd.f32 %v1671, %v1687
    %v1848 = vadd.f32 %v1847, %v1703
    %v1849 = vadd.f32 %v1848, %v1719
    %v1850 = vrot.slane %v1849, 4
    %v1851 = vadd.f32 %v1849, %v1850
    %v1852 = vrot.slane %v1851, 2
    %v1853 = vadd.f32 %v1851, %v1852
    %v1854 = vrot.slane %v1853, 1
    %v1855 = vadd.f32 %v1853, %v1854
    %v1856 = vadd.f32 %v1672, %v1688
    %v1857 = vadd.f32 %v1856, %v1704
    %v1858 = vadd.f32 %v1857, %v1720
    %v1859 = vrot.slane %v1858, 4
    %v1860 = vadd.f32 %v1858, %v1859
    %v1861 = vrot.slane %v1860, 2
    %v1862 = vadd.f32 %v1860, %v1861
    %v1863 = vrot.slane %v1862, 1
    %v1864 = vadd.f32 %v1862, %v1863
    %s1865 = sld [smem:[#allocation2]]
    %v1866 = vstv %s1865
    %v1867 = vadd.f32 %v1729, %v1866
    %v1868 = vadd.f32 %v1738, %v1866
    %v1869 = vadd.f32 %v1747, %v1866
    %v1870 = vadd.f32 %v1756, %v1866
    %v1871 = vadd.f32 %v1765, %v1866
    %v1872 = vadd.f32 %v1774, %v1866
    %v1873 = vadd.f32 %v1783, %v1866
    %v1874 = vadd.f32 %v1792, %v1866
    %v1875 = vadd.f32 %v1801, %v1866
    %v1876 = vadd.f32 %v1810, %v1866
    %v1877 = vadd.f32 %v1819, %v1866
    %v1878 = vadd.f32 %v1828, %v1866
    %v1879 = vadd.f32 %v1837, %v1866
    %v1880 = vadd.f32 %v1846, %v1866
    %v1881 = vadd.f32 %v1855, %v1866
    %v1882 = vadd.f32 %v1864, %v1866
    %v1883 = vxor.u32 %v1867, 2147483648
    %v1884 = vxor.u32 %v1868, 2147483648
    %v1885 = vxor.u32 %v1869, 2147483648
    %v1886 = vxor.u32 %v1870, 2147483648
    %v1887 = vxor.u32 %v1871, 2147483648
    %v1888 = vxor.u32 %v1872, 2147483648
    %v1889 = vxor.u32 %v1873, 2147483648
    %v1890 = vxor.u32 %v1874, 2147483648
    %v1891 = vxor.u32 %v1875, 2147483648
    %v1892 = vxor.u32 %v1876, 2147483648
    %v1893 = vxor.u32 %v1877, 2147483648
    %v1894 = vxor.u32 %v1878, 2147483648
    %v1895 = vxor.u32 %v1879, 2147483648
    %v1896 = vxor.u32 %v1880, 2147483648
    %v1897 = vxor.u32 %v1881, 2147483648
    %v1898 = vxor.u32 %v1882, 2147483648
    %v1899 = vmul.f32 %v1883, 1.442695
    %v1900 = vpow.pop %v1899
    %v1901 = vmul.f32 %v1884, 1.442695
    %v1902 = vpow.pop %v1901
    %v1903 = vmul.f32 %v1885, 1.442695
    %v1904 = vpow.pop %v1903
    %v1905 = vmul.f32 %v1886, 1.442695
    %v1906 = vpow.pop %v1905
    %v1907 = vmul.f32 %v1887, 1.442695
    %v1908 = vpow.pop %v1907
    %v1909 = vmul.f32 %v1888, 1.442695
    %v1910 = vpow.pop %v1909
    %v1911 = vmul.f32 %v1889, 1.442695
    %v1912 = vpow.pop %v1911
    %v1913 = vmul.f32 %v1890, 1.442695
    %v1914 = vpow.pop %v1913
    %v1915 = vmul.f32 %v1891, 1.442695
    %v1916 = vpow.pop %v1915
    %v1917 = vmul.f32 %v1892, 1.442695
    %v1918 = vpow.pop %v1917
    %v1919 = vmul.f32 %v1893, 1.442695
    %v1920 = vpow.pop %v1919
    %v1921 = vmul.f32 %v1894, 1.442695
    %v1922 = vpow.pop %v1921
    %v1923 = vmul.f32 %v1895, 1.442695
    %v1924 = vpow.pop %v1923
    %v1925 = vmul.f32 %v1896, 1.442695
    %v1926 = vpow.pop %v1925
    %v1927 = vmul.f32 %v1897, 1.442695
    %v1928 = vpow.pop %v1927
    %v1929 = vmul.f32 %v1898, 1.442695
    %v1930 = vpow.pop %v1929
    %v1931 = vadd.f32 %v1900, 1.0
    %v1932 = vadd.f32 %v1902, 1.0
    %v1933 = vadd.f32 %v1904, 1.0
    %v1934 = vadd.f32 %v1906, 1.0
    %v1935 = vadd.f32 %v1908, 1.0
    %v1936 = vadd.f32 %v1910, 1.0
    %v1937 = vadd.f32 %v1912, 1.0
    %v1938 = vadd.f32 %v1914, 1.0
    %v1939 = vadd.f32 %v1916, 1.0
    %v1940 = vadd.f32 %v1918, 1.0
    %v1941 = vadd.f32 %v1920, 1.0
    %v1942 = vadd.f32 %v1922, 1.0
    %v1943 = vadd.f32 %v1924, 1.0
    %v1944 = vadd.f32 %v1926, 1.0
    %v1945 = vadd.f32 %v1928, 1.0
    %v1946 = vadd.f32 %v1930, 1.0
    %v1947 = vrcp.pop %v1931
    %v1948 = vmul.f32 1.0, %v1947
    %v1949 = vrcp.pop %v1932
    %v1950 = vmul.f32 1.0, %v1949
    %v1951 = vrcp.pop %v1933
    %v1952 = vmul.f32 1.0, %v1951
    %v1953 = vrcp.pop %v1934
    %v1954 = vmul.f32 1.0, %v1953
    %v1955 = vrcp.pop %v1935
    %v1956 = vmul.f32 1.0, %v1955
    %v1957 = vrcp.pop %v1936
    %v1958 = vmul.f32 1.0, %v1957
    %v1959 = vrcp.pop %v1937
    %v1960 = vmul.f32 1.0, %v1959
    %v1961 = vrcp.pop %v1938
    %v1962 = vmul.f32 1.0, %v1961
    %v1963 = vrcp.pop %v1939
    %v1964 = vmul.f32 1.0, %v1963
    %v1965 = vrcp.pop %v1940
    %v1966 = vmul.f32 1.0, %v1965
    %v1967 = vrcp.pop %v1941
    %v1968 = vmul.f32 1.0, %v1967
    %v1969 = vrcp.pop %v1942
    %v1970 = vmul.f32 1.0, %v1969
    %v1971 = vrcp.pop %v1943
    %v1972 = vmul.f32 1.0, %v1971
    %v1973 = vrcp.pop %v1944
    %v1974 = vmul.f32 1.0, %v1973
    %v1975 = vrcp.pop %v1945
    %v1976 = vmul.f32 1.0, %v1975
    %v1977 = vrcp.pop %v1946
    %v1978 = vmul.f32 1.0, %v1977
    %v1995 = vcombine.low %v1948, %v1950
    %v1996 = vcombine.low %v1952, %v1954
    %v1997 = vcombine.low %v1956, %v1958
    %v1998 = vcombine.low %v1960, %v1962
    %v2000 = vunpack.c.l.s4 1966171168
    %v2001 = vunpack.c.0.s8 %v2000
    %v2002 = vlaneseq
    %v2003 = vshrl.u32 %v2002, 7
    %v2004 = vsub.s32 %v2001, %v2003
    %v2005 = vrot.slane %v1995, %v2004
    %v2007 = vunpack.c.l.s4 1966171168
    %v2008 = vunpack.c.0.s8 %v2007
    %v2009 = vlaneseq
    %v2010 = vshrl.u32 %v2009, 7
    %v2011 = vsub.s32 %v2008, %v2010
    %v2012 = vrot.slane %v1996, %v2011
    %v2014 = vunpack.c.l.s4 1966171168
    %v2015 = vunpack.c.0.s8 %v2014
    %v2016 = vlaneseq
    %v2017 = vshrl.u32 %v2016, 7
    %v2018 = vsub.s32 %v2015, %v2017
    %v2019 = vrot.slane %v1997, %v2018
    %v2021 = vunpack.c.l.s4 1966171168
    %v2022 = vunpack.c.0.s8 %v2021
    %v2023 = vlaneseq
    %v2024 = vshrl.u32 %v2023, 7
    %v2025 = vsub.s32 %v2022, %v2024
    %v2026 = vrot.slane %v1998, %v2025
    %v2027 = vcombine.low %v2005, %v2012
    %v2028 = vcombine.low %v2019, %v2026
    %v2030 = vunpack.c.l.s4 1966171168
    %v2031 = vunpack.c.0.s8 %v2030
    %v2032 = vlaneseq
    %v2033 = vshrl.u32 %v2032, 7
    %v2034 = vsub.s32 %v2031, %v2033
    %v2035 = vrot.slane %v2027, %v2034
    %v2037 = vunpack.c.l.s4 1966171168
    %v2038 = vunpack.c.0.s8 %v2037
    %v2039 = vlaneseq
    %v2040 = vshrl.u32 %v2039, 7
    %v2041 = vsub.s32 %v2038, %v2040
    %v2042 = vrot.slane %v2028, %v2041
    %v2043 = vcombine.low %v2035, %v2042
    %v2044 = vcombine.low %v1964, %v1966
    %v2045 = vcombine.low %v1968, %v1970
    %v2046 = vcombine.low %v1972, %v1974
    %v2047 = vcombine.low %v1976, %v1978
    %v2049 = vunpack.c.l.s4 1966171168
    %v2050 = vunpack.c.0.s8 %v2049
    %v2051 = vlaneseq
    %v2052 = vshrl.u32 %v2051, 7
    %v2053 = vsub.s32 %v2050, %v2052
    %v2054 = vrot.slane %v2044, %v2053
    %v2056 = vunpack.c.l.s4 1966171168
    %v2057 = vunpack.c.0.s8 %v2056
    %v2058 = vlaneseq
    %v2059 = vshrl.u32 %v2058, 7
    %v2060 = vsub.s32 %v2057, %v2059
    %v2061 = vrot.slane %v2045, %v2060
    %v2063 = vunpack.c.l.s4 1966171168
    %v2064 = vunpack.c.0.s8 %v2063
    %v2065 = vlaneseq
    %v2066 = vshrl.u32 %v2065, 7
    %v2067 = vsub.s32 %v2064, %v2066
    %v2068 = vrot.slane %v2046, %v2067
    %v2070 = vunpack.c.l.s4 1966171168
    %v2071 = vunpack.c.0.s8 %v2070
    %v2072 = vlaneseq
    %v2073 = vshrl.u32 %v2072, 7
    %v2074 = vsub.s32 %v2071, %v2073
    %v2075 = vrot.slane %v2047, %v2074
    %v2076 = vcombine.low %v2054, %v2061
    %v2077 = vcombine.low %v2068, %v2075
    %v2079 = vunpack.c.l.s4 1966171168
    %v2080 = vunpack.c.0.s8 %v2079
    %v2081 = vlaneseq
    %v2082 = vshrl.u32 %v2081, 7
    %v2083 = vsub.s32 %v2080, %v2082
    %v2084 = vrot.slane %v2076, %v2083
    %v2086 = vunpack.c.l.s4 1966171168
    %v2087 = vunpack.c.0.s8 %v2086
    %v2088 = vlaneseq
    %v2089 = vshrl.u32 %v2088, 7
    %v2090 = vsub.s32 %v2087, %v2089
    %v2091 = vrot.slane %v2077, %v2090
    %v2092 = vcombine.low %v2084, %v2091
    %2095 = vst [vmem:[#allocation6] sm:$0xff] %v2043
    %2096 = vst [vmem:[#allocation6 + $0x8] sm:$0xff] %v2092
    // Predicated region
    $region34: #{tpu_custom_call.1} parent=1 // pred_check
      _
    $region35: #{tpu_custom_call.1} parent=1 // pred_check_branch
      %2098 = sbr.rel (0) target = $region37
    $region36: #{tpu_custom_call.1} parent=1 // pred_region
      %s2100 = ssub.s32 256, 256
      %2101 = vsyncadd [#allocation5], %s2100
      %s2103 = sshll.u32 [#allocation6], 4
      %s2104 = int_to_ptr.vmem [resolvable:$true] %s2103
      %2106 = dma.vmem_to_hbm [thread:$0]  %s2104, 256, %s7, [#allocation5]
    $region37: #{tpu_custom_call.1} parent=1 // pred_fallthru
      _
    // Predicated region
    $region38: #{tpu_custom_call.1} parent=1 // pred_check
      _
    $region39: #{tpu_custom_call.1} parent=1 // pred_check_branch
      %2108 = sbr.rel (0) target = $region41
    $region40: #{tpu_custom_call.1} parent=1 // pred_region
      %2109 = dma.done [#allocation5], 256
    $region41: #{tpu_custom_call.1} parent=1 // pred_fallthru
      _
    %2110 = vsyncpa [#allocation4], 1
    %2111 = vsyncpa [#allocation5], 1

</llo_original>
